<compile_context>
chip_gen: v6e
topology: v6e:2x2x1
jax: 0.10.0
libtpu: 0.0.40
codegen_flags: <defaults>
</compile_context>

<pallas_src>
import functools

import jax
import jax.numpy as jnp
import numpy as np
from jax.experimental import pallas as pl
from jax.experimental.pallas import tpu as pltpu

# --- Hyperparameters implied by the PyTorch module (small synthetic config) ---
NUM_FEATURES = 4              # len(FEATURES) -> input_channels
SEQUENCE_LENGTH = 16
CNN_FILTERS = (8, 16)
CNN_KERNEL_SIZES = (3, 3)
CNN_POOL_SIZES = (2, 2)
CNN_DROPOUT = 0.2             # identity at inference time
BATCH = 2

# Derived sizes (mirror the `current_size` arithmetic in __init__)
L1 = SEQUENCE_LENGTH - CNN_KERNEL_SIZES[0] + 1      # conv1 "valid" output length
L1P = L1 // CNN_POOL_SIZES[0]                       # after maxpool1
L2 = L1P - CNN_KERNEL_SIZES[1] + 1                  # conv2 output length
L2P = L2 // CNN_POOL_SIZES[1]                       # after maxpool2
FC_IN = L2P * CNN_FILTERS[-1]                       # fc_input_size

_PREC = jax.lax.Precision.HIGHEST                   # full-f32 matmul passes


def _align8(n):
    return (n + 7) // 8 * 8


def slab_layout(batch):
    """Row offsets of each parameter block in the packed f32 slab.

    Every block starts on an 8-row boundary so in-kernel static slices of the
    slab are sublane-aligned plain loads.
    """
    cin = NUM_FEATURES
    c1, c2 = CNN_FILTERS
    k1, k2 = CNN_KERNEL_SIZES
    p1, p2 = CNN_POOL_SIZES
    stride1 = SEQUENCE_LENGTH // p1      # per-sample folded row stride after pool1
    stride2 = stride1 // p2              # per-sample folded row stride after pool2
    h2p_rows = batch * stride2

    lay = {}
    r = 0
    lay["w1"] = r;    r = _align8(r + k1 * cin)      # (k1*cin, c1)
    lay["b1"] = r;    r = _align8(r + 1)             # (1, c1)
    lay["w2"] = r;    r = _align8(r + k2 * c1)       # (k2*c1, c2)
    lay["b2"] = r;    r = _align8(r + 1)             # (1, c2)
    lay["wmask"] = r; r = _align8(r + h2p_rows)      # (batch*stride2, c2) FC weight mask
    lay["sel"] = r;   r = _align8(r + batch)         # (batch, batch*stride2) row selector
    lay["bfc"] = r;   r = _align8(r + 1)             # (1, 1)
    rows = r
    cols = max(c1, c2, h2p_rows)
    return lay, rows, cols


def cnn_kernel(x_ref, p_ref, o_ref, s1, s2, s3, *, batch, seq_len, lay):
    """Whole forward pass, fully resident in VMEM.

    x_ref : (B*L, Cin)          input with batch folded into rows (row j = b*L + t)
    p_ref : (SLAB_ROWS, COLS)   packed parameters (w1, b1, w2, b2, wmask, sel, bfc)
    o_ref : (B, 1)              sigmoid outputs
    s1/s2/s3                    small VMEM scratch used for strided pooling reads
    """
    cin = x_ref.shape[1]
    c1, c2 = CNN_FILTERS
    k1, k2 = CNN_KERNEL_SIZES
    p1, p2 = CNN_POOL_SIZES
    stride1 = seq_len // p1
    stride2 = stride1 // p2
    l1p = (seq_len - k1 + 1) // p1
    l2 = l1p - k2 + 1

    n1 = batch * seq_len - k1 + 1         # conv1 folded output rows
    n2 = (batch - 1) * stride1 + l2       # conv2 folded output rows
    h1p_rows = n2 + k2 - 1                # pooled-1 rows materialized
    h2p_rows = batch * stride2            # pooled-2 rows (incl. zero-masked ones)

    # ---- Conv1d #1 ("valid") as ONE matmul: im2col over the k1 taps against
    # the contiguous (k1*cin, c1) weight block.  Batch is folded into M; rows
    # straddling a sample boundary are computed but never selected downstream.
    im1 = jnp.concatenate([x_ref[k:k + n1, :] for k in range(k1)], axis=1)
    w1 = p_ref[lay["w1"]:lay["w1"] + k1 * cin, 0:c1]
    b1 = p_ref[lay["b1"]:lay["b1"] + 1, 0:c1]
    h1 = jnp.maximum(
        jnp.dot(im1, w1, precision=_PREC, preferred_element_type=jnp.float32) + b1,
        0.0)                                                    # (n1, c1)

    # ---- MaxPool1d #1: one store, p1 strided sublane reads, elementwise max.
    s1[0:n1, :] = h1
    h1p = s1[pl.ds(0, h1p_rows, p1), :]
    for i in range(1, p1):
        h1p = jnp.maximum(h1p, s1[pl.ds(i, h1p_rows, p1), :])   # (h1p_rows, c1)

    # ---- Conv1d #2: same single-matmul scheme; windows read from scratch ref.
    s2[0:h1p_rows, :] = h1p
    im2 = jnp.concatenate([s2[k:k + n2, :] for k in range(k2)], axis=1)
    w2 = p_ref[lay["w2"]:lay["w2"] + k2 * c1, 0:c2]
    b2 = p_ref[lay["b2"]:lay["b2"] + 1, 0:c2]
    h2 = jnp.maximum(
        jnp.dot(im2, w2, precision=_PREC, preferred_element_type=jnp.float32) + b2,
        0.0)                                                    # (n2, c2)

    # ---- MaxPool1d #2 + Flatten + Dropout(identity) + Linear + Sigmoid, fused.
    # Scratch is zero-filled so rows past n2 (touched by the strided pool read)
    # are finite; garbage pooled rows are killed by the host-built weight mask.
    s3[...] = jnp.zeros(s3.shape, s3.dtype)
    s3[0:n2, :] = h2
    h2p = s3[pl.ds(0, h2p_rows, p2), :]
    for i in range(1, p2):
        h2p = jnp.maximum(h2p, s3[pl.ds(i, h2p_rows, p2), :])   # (h2p_rows, c2)

    wmask = p_ref[lay["wmask"]:lay["wmask"] + h2p_rows, 0:c2]   # FC weight, re-laid out
    sel = p_ref[lay["sel"]:lay["sel"] + batch, 0:h2p_rows]      # per-sample row selector
    bfc = p_ref[lay["bfc"]:lay["bfc"] + 1, 0:1]

    # TODO(synk): training-mode dropout (PRNG masking / scaling) not implemented.
    acc = jnp.dot(sel, h2p * wmask, precision=_PREC,
                  preferred_element_type=jnp.float32)           # (batch, c2) accumulate
    logits = jnp.sum(acc, axis=1, keepdims=True) + bfc          # one cross-lane reduce
    o_ref[...] = jax.nn.sigmoid(logits)                         # single (B,1) store


def make_params(key):
    """Deterministic parameter init with PyTorch-convention shapes."""
    ks = jax.random.split(key, 6)
    c1, c2 = CNN_FILTERS
    return dict(
        w1=0.2 * jax.random.normal(ks[0], (c1, NUM_FEATURES, CNN_KERNEL_SIZES[0]), jnp.float32),
        b1=0.1 * jax.random.normal(ks[1], (c1,), jnp.float32),
        w2=0.2 * jax.random.normal(ks[2], (c2, c1, CNN_KERNEL_SIZES[1]), jnp.float32),
        b2=0.1 * jax.random.normal(ks[3], (c2,), jnp.float32),
        wfc=0.2 * jax.random.normal(ks[4], (1, FC_IN), jnp.float32),
        bfc=0.1 * jax.random.normal(ks[5], (1,), jnp.float32),
    )


def pack_params(params, batch):
    """Glue (runs ONCE, off the hot path): re-layout PyTorch-convention weights
    into a single f32 slab so the kernel sees exactly one parameter DMA."""
    cin = NUM_FEATURES
    c1, c2 = CNN_FILTERS
    k1, k2 = CNN_KERNEL_SIZES
    p1, p2 = CNN_POOL_SIZES
    stride1 = SEQUENCE_LENGTH // p1
    stride2 = stride1 // p2
    lay, rows, cols = slab_layout(batch)

    # Conv weights (Cout, Cin, K) -> (K*Cin, Cout): row index k*Cin + c_in.
    w1 = jnp.transpose(params["w1"], (2, 1, 0)).reshape(k1 * cin, c1)
    w2 = jnp.transpose(params["w2"], (2, 1, 0)).reshape(k2 * c1, c2)

    # FC weight mask over the folded pooled rows (batch*stride2, c2):
    # row b*stride2 + t holds wfc[:, c*L2P + t] for t < L2P, zero otherwise
    # (zeros kill the boundary/garbage rows produced by the folded scheme).
    wfc_tc = params["wfc"].reshape(c2, L2P).T                    # (L2P, c2)
    wmask_block = jnp.zeros((stride2, c2), jnp.float32).at[:L2P, :].set(wfc_tc)
    wmask = jnp.tile(wmask_block, (batch, 1))                    # (batch*stride2, c2)

    # Per-sample row selector: sel[b, j] = 1 iff folded pooled row j is sample b's.
    sel = jnp.repeat(jnp.eye(batch, dtype=jnp.float32), stride2, axis=1)

    slab = jnp.zeros((rows, cols), jnp.float32)
    slab = slab.at[lay["w1"]:lay["w1"] + k1 * cin, :c1].set(w1)
    slab = slab.at[lay["b1"], :c1].set(params["b1"])
    slab = slab.at[lay["w2"]:lay["w2"] + k2 * c1, :c2].set(w2)
    slab = slab.at[lay["b2"], :c2].set(params["b2"])
    slab = slab.at[lay["wmask"]:lay["wmask"] + batch * stride2, :c2].set(wmask)
    slab = slab.at[lay["sel"]:lay["sel"] + batch, :batch * stride2].set(sel)
    slab = slab.at[lay["bfc"], 0].set(params["bfc"][0])
    return slab


def cnn_forward_pallas(x, slab):
    batch, seq_len, cin = x.shape
    c1, c2 = CNN_FILTERS
    k1, k2 = CNN_KERNEL_SIZES
    p1, p2 = CNN_POOL_SIZES
    lay, rows, cols = slab_layout(batch)

    # Folded-batch invariants: garbage rows at sample boundaries must never be
    # selected by the pooling reads / FC mask (trace-time checks).
    stride1 = seq_len // p1
    stride2 = stride1 // p2
    l1 = seq_len - k1 + 1
    l1p = l1 // p1
    l2 = l1p - k2 + 1
    l2p = l2 // p2
    n1 = batch * seq_len - k1 + 1
    n2 = (batch - 1) * stride1 + l2
    h1p_rows = n2 + k2 - 1
    h2p_rows = batch * stride2
    assert seq_len % p1 == 0 and stride1 % p2 == 0, "folded pooling needs divisible strides"
    assert l1 >= 1 and l2 >= 1 and l2p >= 1
    assert l1p <= stride1 and l2p <= stride2
    assert h1p_rows * p1 <= n1, "pool1 strided read would cross into unwritten rows"
    assert slab.shape == (rows, cols)

    s1_rows = _align8(n1)
    s2_rows = _align8(h1p_rows)
    s3_rows = _align8(max(n2, h2p_rows * p2))

    kernel = functools.partial(cnn_kernel, batch=batch, seq_len=seq_len, lay=lay)

    # Single fused, gridless invocation: KiB working set, 2 input DMAs, 1 output.
    # v5e/v6e have one TensorCore; on v7x a "parallel" batch grid axis across the
    # two TCs only pays once BATCH grows well beyond a couple of samples.
    return pl.pallas_call(
        kernel,
        out_shape=jax.ShapeDtypeStruct((batch, 1), jnp.float32),
        in_specs=[pl.BlockSpec(memory_space=pltpu.MemorySpace.VMEM),
                  pl.BlockSpec(memory_space=pltpu.MemorySpace.VMEM)],
        out_specs=pl.BlockSpec(memory_space=pltpu.MemorySpace.VMEM),
        scratch_shapes=[pltpu.VMEM((s1_rows, c1), jnp.float32),
                        pltpu.VMEM((s2_rows, c1), jnp.float32),
                        pltpu.VMEM((s3_rows, c2), jnp.float32)],
    )(x.reshape(batch * seq_len, cin), slab)


def cnn_forward_reference(x, params):
    """Pure-JAX mirror of the PyTorch forward (NCW internally), for checking."""
    h = jnp.transpose(x, (0, 2, 1))                  # x.permute(0, 2, 1)

    def conv1d(h, w, b):
        out = jax.lax.conv_general_dilated(
            h, w, window_strides=(1,), padding="VALID",
            dimension_numbers=("NCH", "OIH", "NCH"), precision=_PREC)
        return out + b[None, :, None]

    def maxpool1d(h, p):
        bsz, c, ln = h.shape
        lp = ln // p
        return jnp.max(h[:, :, :lp * p].reshape(bsz, c, lp, p), axis=-1)

    h = maxpool1d(jnp.maximum(conv1d(h, params["w1"], params["b1"]), 0.0),
                  CNN_POOL_SIZES[0])
    h = maxpool1d(jnp.maximum(conv1d(h, params["w2"], params["b2"]), 0.0),
                  CNN_POOL_SIZES[1])
    h = h.reshape(h.shape[0], -1)                    # Flatten (C, L) -> c*L2P + l
    logits = jnp.dot(h, params["wfc"].T, precision=_PREC) + params["bfc"]
    return jax.nn.sigmoid(logits)


if __name__ == "__main__":
    key = jax.random.PRNGKey(0)
    kx, kp = jax.random.split(key)
    x = jax.random.normal(kx, (BATCH, SEQUENCE_LENGTH, NUM_FEATURES), jnp.float32)
    params = make_params(kp)

    # Pack parameters once (cached outside the hot path); forward is jitted.
    slab = jax.block_until_ready(pack_params(params, BATCH))
    fwd = jax.jit(cnn_forward_pallas)

    out = jax.block_until_ready(fwd(x, slab))
    ref = jax.block_until_ready(cnn_forward_reference(x, params))

    assert out.shape == (BATCH, 1)
    np.testing.assert_allclose(np.asarray(out), np.asarray(ref),
                               rtol=1e-5, atol=1e-5)
    print("KERNEL_OK")
</pallas_src>

<mosaic_0001>
module attributes {stable_mosaic.version = 11 : i64} {
  func.func @cnn_kernel(%arg0: memref<32x4xf32, #tpu.memory_space<vmem>>, %arg1: memref<80x16xf32, #tpu.memory_space<vmem>>, %arg2: memref<2x1xf32, #tpu.memory_space<vmem>>, %arg3: memref<32x8xf32, #tpu.memory_space<vmem>>, %arg4: memref<16x8xf32, #tpu.memory_space<vmem>>, %arg5: memref<16x16xf32, #tpu.memory_space<vmem>>) attributes {dimension_semantics = [], scalar_prefetch = 0 : i64, scratch_operands = 3 : i64, tpu.core_type = #tpu.core_type<tc>} {
    %c0 = arith.constant 0 : index
    %c0_0 = arith.constant 0 : index
    %0 = vector.load %arg0[%c0, %c0_0] : memref<32x4xf32, #tpu.memory_space<vmem>>, vector<30x4xf32>
    %c1 = arith.constant 1 : index
    %c0_1 = arith.constant 0 : index
    %1 = vector.load %arg0[%c1, %c0_1] : memref<32x4xf32, #tpu.memory_space<vmem>>, vector<30x4xf32>
    %c2 = arith.constant 2 : index
    %c0_2 = arith.constant 0 : index
    %2 = vector.load %arg0[%c2, %c0_2] : memref<32x4xf32, #tpu.memory_space<vmem>>, vector<30x4xf32>
    %3 = tpu.concatenate %0, %1, %2 in 1 : vector<30x4xf32>, vector<30x4xf32>, vector<30x4xf32> -> vector<30x12xf32>
    %c0_3 = arith.constant 0 : index
    %c0_4 = arith.constant 0 : index
    %4 = vector.load %arg1[%c0_3, %c0_4] : memref<80x16xf32, #tpu.memory_space<vmem>>, vector<12x8xf32>
    %c16 = arith.constant 16 : index
    %c0_5 = arith.constant 0 : index
    %5 = vector.load %arg1[%c16, %c0_5] : memref<80x16xf32, #tpu.memory_space<vmem>>, vector<1x8xf32>
    %cst = arith.constant dense<0.000000e+00> : vector<30x8xf32>
    %6 = tpu.matmul %3, %4, %cst {dimension_numbers = #tpu.dot_dimension_numbers<[1], [0], [0], [1], [0, 0, 1, 1], [], []>, precision = #tpu.contract_precision<fp32>} : vector<30x12xf32>, vector<12x8xf32>, vector<30x8xf32> -> vector<30x8xf32>
    %7 = vector.broadcast %5 : vector<1x8xf32> to vector<30x8xf32>
    %8 = arith.addf %6, %7 : vector<30x8xf32>
    %cst_6 = arith.constant 0.000000e+00 : f32
    %9 = vector.broadcast %cst_6 : f32 to vector<30x8xf32>
    %10 = arith.maximumf %8, %9 : vector<30x8xf32>
    %c0_7 = arith.constant 0 : index
    %c0_8 = arith.constant 0 : index
    %11 = vector.load %arg3[%c0_7, %c0_8] : memref<32x8xf32, #tpu.memory_space<vmem>>, vector<30x8xf32>
    tpu.vector_store %arg3[%c0_7, %c0_8], %10 {strides = array<i32>} : memref<32x8xf32, #tpu.memory_space<vmem>>, vector<30x8xf32>,
    %c0_9 = arith.constant 0 : index
    %c0_10 = arith.constant 0 : index
    %12 = tpu.strided_load %arg3[%c0_9, %c0_10] {strides = array<i32: 2, 1>} : memref<32x8xf32, #tpu.memory_space<vmem>>, vector<15x8xf32>
    %c1_11 = arith.constant 1 : index
    %c0_12 = arith.constant 0 : index
    %13 = tpu.strided_load %arg3[%c1_11, %c0_12] {strides = array<i32: 2, 1>} : memref<32x8xf32, #tpu.memory_space<vmem>>, vector<15x8xf32>
    %14 = arith.maximumf %12, %13 : vector<15x8xf32>
    %c0_13 = arith.constant 0 : index
    %c0_14 = arith.constant 0 : index
    %15 = vector.load %arg4[%c0_13, %c0_14] : memref<16x8xf32, #tpu.memory_space<vmem>>, vector<15x8xf32>
    tpu.vector_store %arg4[%c0_13, %c0_14], %14 {strides = array<i32>} : memref<16x8xf32, #tpu.memory_space<vmem>>, vector<15x8xf32>,
    %c0_15 = arith.constant 0 : index
    %c0_16 = arith.constant 0 : index
    %16 = vector.load %arg4[%c0_15, %c0_16] : memref<16x8xf32, #tpu.memory_space<vmem>>, vector<13x8xf32>
    %c1_17 = arith.constant 1 : index
    %c0_18 = arith.constant 0 : index
    %17 = vector.load %arg4[%c1_17, %c0_18] : memref<16x8xf32, #tpu.memory_space<vmem>>, vector<13x8xf32>
    %c2_19 = arith.constant 2 : index
    %c0_20 = arith.constant 0 : index
    %18 = vector.load %arg4[%c2_19, %c0_20] : memref<16x8xf32, #tpu.memory_space<vmem>>, vector<13x8xf32>
    %19 = tpu.concatenate %16, %17, %18 in 1 : vector<13x8xf32>, vector<13x8xf32>, vector<13x8xf32> -> vector<13x24xf32>
    %c24 = arith.constant 24 : index
    %c0_21 = arith.constant 0 : index
    %20 = vector.load %arg1[%c24, %c0_21] : memref<80x16xf32, #tpu.memory_space<vmem>>, vector<24x16xf32>
    %c48 = arith.constant 48 : index
    %c0_22 = arith.constant 0 : index
    %21 = vector.load %arg1[%c48, %c0_22] : memref<80x16xf32, #tpu.memory_space<vmem>>, vector<1x16xf32>
    %cst_23 = arith.constant dense<0.000000e+00> : vector<13x16xf32>
    %22 = tpu.matmul %19, %20, %cst_23 {dimension_numbers = #tpu.dot_dimension_numbers<[1], [0], [0], [1], [0, 0, 1, 1], [], []>, precision = #tpu.contract_precision<fp32>} : vector<13x24xf32>, vector<24x16xf32>, vector<13x16xf32> -> vector<13x16xf32>
    %23 = vector.broadcast %21 : vector<1x16xf32> to vector<13x16xf32>
    %24 = arith.addf %22, %23 : vector<13x16xf32>
    %cst_24 = arith.constant 0.000000e+00 : f32
    %25 = vector.broadcast %cst_24 : f32 to vector<13x16xf32>
    %26 = arith.maximumf %24, %25 : vector<13x16xf32>
    %cst_25 = arith.constant 0.000000e+00 : f32
    %27 = vector.broadcast %cst_25 : f32 to vector<16x16xf32>
    %c0_26 = arith.constant 0 : index
    %c0_27 = arith.constant 0 : index
    %28 = vector.load %arg5[%c0_26, %c0_27] : memref<16x16xf32, #tpu.memory_space<vmem>>, vector<16x16xf32>
    tpu.vector_store %arg5[%c0_26, %c0_27], %27 {strides = array<i32>} : memref<16x16xf32, #tpu.memory_space<vmem>>, vector<16x16xf32>,
    %c0_28 = arith.constant 0 : index
    %c0_29 = arith.constant 0 : index
    %29 = vector.load %arg5[%c0_28, %c0_29] : memref<16x16xf32, #tpu.memory_space<vmem>>, vector<13x16xf32>
    tpu.vector_store %arg5[%c0_28, %c0_29], %26 {strides = array<i32>} : memref<16x16xf32, #tpu.memory_space<vmem>>, vector<13x16xf32>,
    %c0_30 = arith.constant 0 : index
    %c0_31 = arith.constant 0 : index
    %30 = tpu.strided_load %arg5[%c0_30, %c0_31] {strides = array<i32: 2, 1>} : memref<16x16xf32, #tpu.memory_space<vmem>>, vector<8x16xf32>
    %c1_32 = arith.constant 1 : index
    %c0_33 = arith.constant 0 : index
    %31 = tpu.strided_load %arg5[%c1_32, %c0_33] {strides = array<i32: 2, 1>} : memref<16x16xf32, #tpu.memory_space<vmem>>, vector<8x16xf32>
    %32 = arith.maximumf %30, %31 : vector<8x16xf32>
    %c56 = arith.constant 56 : index
    %c0_34 = arith.constant 0 : index
    %33 = vector.load %arg1[%c56, %c0_34] : memref<80x16xf32, #tpu.memory_space<vmem>>, vector<8x16xf32>
    %c64 = arith.constant 64 : index
    %c0_35 = arith.constant 0 : index
    %34 = vector.load %arg1[%c64, %c0_35] : memref<80x16xf32, #tpu.memory_space<vmem>>, vector<2x8xf32>
    %c72 = arith.constant 72 : index
    %c0_36 = arith.constant 0 : index
    %35 = vector.load %arg1[%c72, %c0_36] : memref<80x16xf32, #tpu.memory_space<vmem>>, vector<1x1xf32>
    %36 = arith.mulf %32, %33 : vector<8x16xf32>
    %cst_37 = arith.constant dense<0.000000e+00> : vector<2x16xf32>
    %37 = tpu.matmul %34, %36, %cst_37 {dimension_numbers = #tpu.dot_dimension_numbers<[1], [0], [0], [1], [0, 0, 1, 1], [], []>, precision = #tpu.contract_precision<fp32>} : vector<2x8xf32>, vector<8x16xf32>, vector<2x16xf32> -> vector<2x16xf32>
    %cst_38 = arith.constant dense<0.000000e+00> : vector<2xf32>
    %38 = vector.multi_reduction <add>, %37, %cst_38 [1] : vector<2x16xf32> to vector<2xf32>
    %39 = vector.shape_cast %38 : vector<2xf32> to vector<2x1xf32>
    %40 = vector.broadcast %35 : vector<1x1xf32> to vector<2x1xf32>
    %41 = arith.addf %39, %40 : vector<2x1xf32>
    %42 = arith.negf %41 : vector<2x1xf32>
    %43 = math.exp %42 : vector<2x1xf32>
    %cst_39 = arith.constant 1.000000e+00 : f32
    %44 = vector.broadcast %cst_39 : f32 to vector<2x1xf32>
    %45 = arith.addf %44, %43 : vector<2x1xf32>
    %46 = arith.divf %44, %45 : vector<2x1xf32>
    %c0_40 = arith.constant 0 : index
    %c0_41 = arith.constant 0 : index
    %47 = vector.load %arg2[%c0_40, %c0_41] : memref<2x1xf32, #tpu.memory_space<vmem>>, vector<2x1xf32>
    tpu.vector_store %arg2[%c0_40, %c0_41], %46 {strides = array<i32>} : memref<2x1xf32, #tpu.memory_space<vmem>>, vector<2x1xf32>,
    return
  }
}

</mosaic_0001>

<llo_original>
// kernel: cnn_forward_pallas.1
$region0: #{cnn_forward_pallas.1}
  #allocation0 [shape = 'u32[]', space=smem, size = 0x4, offset = 0x4, fixed_abs, tag = 'smem constant byte address 0x4 - core index']
  #allocation1 [shape = 'u32[144,128]{1,0:T(1,128)}', space=vmem, size = 0x12000, scoped, tag = 'internal scratch']
  #allocation2 [shape = 'f32[32,8]{1,0:T(8,128)}', space=vmem, size = 0x4000, scoped, tag = 'scratch operand']
  #allocation3 [shape = 'f32[16,8]{1,0:T(8,128)}', space=vmem, size = 0x2000, scoped, tag = 'scratch operand']
  #allocation4 [shape = 'f32[16,16]{1,0:T(8,128)}', space=vmem, size = 0x2000, scoped, tag = 'scratch operand']
  %s0 = inlined_call_operand.vmem [shape: f32[32,4], index: 0, kind: input, shape index: {}]
  %s1 = inlined_call_operand.vmem [shape: f32[80,16], index: 1, kind: input, shape index: {}]
  %s2 = inlined_call_operand.vmem [shape: f32[2,1], index: 2, kind: output, shape index: {}]
  %s3 = sld [smem:[#allocation0]]
  $region18: #{cnn_forward_pallas.1} parent=0
    _
  %s5 = ssub.s32 1, %s3
  %s6 = scalar_select 0, %s5, %s3
  // Predicated region
  $region2: #{cnn_forward_pallas.1} parent=0 // pred_check
    _
  $region3: #{cnn_forward_pallas.1} parent=0 // pred_check_branch
    %8 = sbr.rel (0) target = $region5
  $region4: #{cnn_forward_pallas.1} parent=0 // pred_region
    _
  $region5: #{cnn_forward_pallas.1} parent=0 // pred_fallthru
    _
  // Predicated region
  $region6: #{cnn_forward_pallas.1} parent=0 // pred_check
    _
  $region7: #{cnn_forward_pallas.1} parent=0 // pred_check_branch
    %10 = sbr.rel (0) target = $region9
  $region8: #{cnn_forward_pallas.1} parent=0 // pred_region
    _
  $region9: #{cnn_forward_pallas.1} parent=0 // pred_fallthru
    _
  %v11 = vld [vmem:[%s0] sm:$0xff]
  %v12 = vld [vmem:[%s0 + $0x8] sm:$0xff]
  %v13 = vld [vmem:[%s0 + $0x10] sm:$0xff]
  %v14 = vld [vmem:[%s0 + $0x18] sm:$0x3f]
  %v15 = vld [vmem:[%s0 + $0x1] sm:$0xff]
  %v16 = vld [vmem:[%s0 + $0x9] sm:$0xff]
  %v17 = vld [vmem:[%s0 + $0x11] sm:$0xff]
  %v18 = vld [vmem:[%s0 + $0x19] sm:$0x3f]
  %v19 = vld [vmem:[%s0 + $0x2] sm:$0xff]
  %v20 = vld [vmem:[%s0 + $0xa] sm:$0xff]
  %v21 = vld [vmem:[%s0 + $0x12] sm:$0xff]
  %v22 = vld [vmem:[%s0 + $0x1a] sm:$0x3f]
  %27 = vrot.lane.b32.xlu0 %v15, 4
  %v28 = vpop.permute.xlu0 %27
  %29 = vrot.lane.b32.xlu0 %v16, 4
  %v30 = vpop.permute.xlu0 %29
  %31 = vrot.lane.b32.xlu0 %v17, 4
  %v32 = vpop.permute.xlu0 %31
  %33 = vrot.lane.b32.xlu0 %v18, 4
  %v34 = vpop.permute.xlu0 %33
  %43 = vrot.lane.b32.xlu0 %v19, 8
  %v44 = vpop.permute.xlu0 %43
  %45 = vrot.lane.b32.xlu0 %v20, 8
  %v46 = vpop.permute.xlu0 %45
  %47 = vrot.lane.b32.xlu0 %v21, 8
  %v48 = vpop.permute.xlu0 %47
  %49 = vrot.lane.b32.xlu0 %v22, 8
  %v50 = vpop.permute.xlu0 %49
  %vm55 = vcmask 31744
  %v56 = vsel %vm55, %v11, %v28
  %v57 = vsel %vm55, %v12, %v30
  %v58 = vsel %vm55, %v13, %v32
  %v59 = vsel %vm55, %v14, %v34
  %vm60 = vcmask 64512
  %v61 = vsel %vm60, %v56, %v44
  %v62 = vsel %vm60, %v57, %v46
  %v63 = vsel %vm60, %v58, %v48
  %v64 = vsel %vm60, %v59, %v50
  %v65 = vld [vmem:[%s1] sm:$0xff]
  %v66 = vld [vmem:[%s1 + $0x8] sm:$0xf]
  %v67 = vld [vmem:[%s1 + $0x10] sm:$0x1]
  %v68 = vlaneseq
  %v69 = vshrl.u32 %v68, 7
  %v70 = vsub.s32 0, %v69
  %v71 = vrot.slane %v67, %v70
  %vm72 = vcmask 97280
  %v74 = vsel %vm72, %v61, 0
  %v77 = vsel %vm72, %v62, 0
  %v80 = vsel %vm72, %v63, 0
  %v83 = vsel %vm72, %v64, 0
  %vm85 = vcmask 1043456
  %v87 = vsel %vm85, %v66, 0
  %89 = vmatprep.subr.mxu0 0.0
  %90 = vmatpush1.msra.mxu0 0.0
  %91 = vmatprep.subr.mxu0 0.0
  %92 = vmatpush1.msra.mxu0 0.0
  %93 = vmatprep.subr.mxu0 0.0
  %94 = vmatpush1.msra.mxu0 0.0
  %95 = vmatprep.subr.mxu0 0.0
  %96 = vmatpush1.msra.mxu0 0.0
  %97 = vmatprep.subr.mxu0 0.0
  %98 = vmatpush1.msra.mxu0 0.0
  %99 = vmatprep.subr.mxu0 0.0
  %100 = vmatpush1.msra.mxu0 0.0
  %101 = vmatprep.subr.mxu0 0.0
  %102 = vmatpush1.msra.mxu0 0.0
  %103 = vmatprep.subr.mxu0 0.0
  %104 = vmatpush1.msra.mxu0 0.0
  %105 = vmatprep.subr.mxu0 0.0
  %106 = vmatpush1.msra.mxu0 0.0
  %107 = vmatprep.subr.mxu0 0.0
  %108 = vmatpush1.msra.mxu0 0.0
  %109 = vmatprep.subr.mxu0 0.0
  %110 = vmatpush1.msra.mxu0 0.0
  %111 = vmatprep.subr.mxu0 0.0
  %112 = vmatpush1.msra.mxu0 0.0
  %113 = vmatprep.subr.mxu0 0.0
  %114 = vmatpush1.msra.mxu0 0.0
  %115 = vmatprep.subr.mxu0 0.0
  %116 = vmatpush1.msra.mxu0 0.0
  %117 = vmatprep.subr.mxu0 0.0
  %v118 = vand.u32 %v87, 4294901760
  %119 = vmatpush1.msra.mxu0 %v118
  %120 = vmatprep.subr.mxu0 0.0
  %v121 = vand.u32 %v65, 4294901760
  %122 = vmatpush1.msra.mxu0 %v121
  %123 = vmatprep.subr.mxu0 0.0
  %124 = vmatpush2.msra.mxu0 0.0
  %125 = vmatprep.subr.mxu0 0.0
  %126 = vmatpush2.msra.mxu0 0.0
  %127 = vmatprep.subr.mxu0 0.0
  %128 = vmatpush2.msra.mxu0 0.0
  %129 = vmatprep.subr.mxu0 0.0
  %130 = vmatpush2.msra.mxu0 0.0
  %131 = vmatprep.subr.mxu0 0.0
  %132 = vmatpush2.msra.mxu0 0.0
  %133 = vmatprep.subr.mxu0 0.0
  %134 = vmatpush2.msra.mxu0 0.0
  %135 = vmatprep.subr.mxu0 0.0
  %136 = vmatpush2.msra.mxu0 0.0
  %137 = vmatprep.subr.mxu0 0.0
  %138 = vmatpush2.msra.mxu0 0.0
  %139 = vmatprep.subr.mxu0 0.0
  %140 = vmatpush2.msra.mxu0 0.0
  %141 = vmatprep.subr.mxu0 0.0
  %142 = vmatpush2.msra.mxu0 0.0
  %143 = vmatprep.subr.mxu0 0.0
  %144 = vmatpush2.msra.mxu0 0.0
  %145 = vmatprep.subr.mxu0 0.0
  %146 = vmatpush2.msra.mxu0 0.0
  %147 = vmatprep.subr.mxu0 0.0
  %148 = vmatpush2.msra.mxu0 0.0
  %149 = vmatprep.subr.mxu0 0.0
  %150 = vmatpush2.msra.mxu0 0.0
  %151 = vmatprep.subr.mxu0 0.0
  %152 = vmatpush2.msra.mxu0 0.0
  %153 = vmatprep.subr.mxu0 0.0
  %154 = vmatpush2.msra.mxu0 0.0
  %155 = vmatprep.mubr.f32.mxu0 0.0
  %v156 = vand.u32 %v74, 4294901760
  %v157 = vsub.f32 %v74, %v156
  %v158 = vand.u32 %v157, 4294901760
  %v159 = vsub.f32 %v157, %v158
  %v160 = vand.u32 %v159, 4294901760
  %161 = vmatmul.mubr.f32.gmra.mxu0 %v160
  %v162 = vpop.f32.mrf.mxu0
  %v163 = vadd.f32 %v71, %v162
  %v164 = vpop.f32.mrf.mxu0
  %165 = vmatprep.mubr.f32.mxu0 0.0
  %v166 = vand.u32 %v77, 4294901760
  %v167 = vsub.f32 %v77, %v166
  %v168 = vand.u32 %v167, 4294901760
  %v169 = vsub.f32 %v167, %v168
  %v170 = vand.u32 %v169, 4294901760
  %171 = vmatmul.mubr.f32.gmra.mxu0 %v170
  %v172 = vpop.f32.mrf.mxu0
  %v173 = vadd.f32 %v71, %v172
  %v174 = vpop.f32.mrf.mxu0
  %175 = vmatprep.mubr.f32.mxu0 0.0
  %v176 = vand.u32 %v80, 4294901760
  %v177 = vsub.f32 %v80, %v176
  %v178 = vand.u32 %v177, 4294901760
  %v179 = vsub.f32 %v177, %v178
  %v180 = vand.u32 %v179, 4294901760
  %181 = vmatmul.mubr.f32.gmra.mxu0 %v180
  %v182 = vpop.f32.mrf.mxu0
  %v183 = vadd.f32 %v71, %v182
  %v184 = vpop.f32.mrf.mxu0
  %185 = vmatprep.mubr.f32.mxu0 0.0
  %v186 = vand.u32 %v83, 4294901760
  %v187 = vsub.f32 %v83, %v186
  %v188 = vand.u32 %v187, 4294901760
  %v189 = vsub.f32 %v187, %v188
  %v190 = vand.u32 %v189, 4294901760
  %191 = vmatmul.mubr.f32.gmra.mxu0 %v190
  %v192 = vpop.f32.mrf.mxu0
  %v193 = vadd.f32 %v71, %v192
  %v194 = vpop.f32.mrf.mxu0
  %195 = vdwg.mxu0
  %196 = vmatprep.subr.mxu0 0.0
  %197 = vmatpush1.msra.mxu0 0.0
  %198 = vmatprep.subr.mxu0 0.0
  %199 = vmatpush1.msra.mxu0 0.0
  %200 = vmatprep.subr.mxu0 0.0
  %201 = vmatpush1.msra.mxu0 0.0
  %202 = vmatprep.subr.mxu0 0.0
  %203 = vmatpush1.msra.mxu0 0.0
  %204 = vmatprep.subr.mxu0 0.0
  %205 = vmatpush1.msra.mxu0 0.0
  %206 = vmatprep.subr.mxu0 0.0
  %207 = vmatpush1.msra.mxu0 0.0
  %208 = vmatprep.subr.mxu0 0.0
  %209 = vmatpush1.msra.mxu0 0.0
  %210 = vmatprep.subr.mxu0 0.0
  %211 = vmatpush1.msra.mxu0 0.0
  %212 = vmatprep.subr.mxu0 0.0
  %213 = vmatpush1.msra.mxu0 0.0
  %214 = vmatprep.subr.mxu0 0.0
  %215 = vmatpush1.msra.mxu0 0.0
  %216 = vmatprep.subr.mxu0 0.0
  %217 = vmatpush1.msra.mxu0 0.0
  %218 = vmatprep.subr.mxu0 0.0
  %219 = vmatpush1.msra.mxu0 0.0
  %220 = vmatprep.subr.mxu0 0.0
  %221 = vmatpush1.msra.mxu0 0.0
  %222 = vmatprep.subr.mxu0 0.0
  %223 = vmatpush1.msra.mxu0 0.0
  %224 = vmatprep.subr.mxu0 0.0
  %v225 = vand.u32 %v87, 4294901760
  %v226 = vsub.f32 %v87, %v225
  %v227 = vand.u32 %v226, 4294901760
  %v228 = vsub.f32 %v226, %v227
  %v229 = vand.u32 %v228, 4294901760
  %230 = vmatpush1.msra.mxu0 %v229
  %231 = vmatprep.subr.mxu0 0.0
  %v232 = vand.u32 %v65, 4294901760
  %v233 = vsub.f32 %v65, %v232
  %v234 = vand.u32 %v233, 4294901760
  %v235 = vsub.f32 %v233, %v234
  %v236 = vand.u32 %v235, 4294901760
  %237 = vmatpush1.msra.mxu0 %v236
  %238 = vmatprep.subr.mxu0 0.0
  %239 = vmatpush2.msra.mxu0 0.0
  %240 = vmatprep.subr.mxu0 0.0
  %241 = vmatpush2.msra.mxu0 0.0
  %242 = vmatprep.subr.mxu0 0.0
  %243 = vmatpush2.msra.mxu0 0.0
  %244 = vmatprep.subr.mxu0 0.0
  %245 = vmatpush2.msra.mxu0 0.0
  %246 = vmatprep.subr.mxu0 0.0
  %247 = vmatpush2.msra.mxu0 0.0
  %248 = vmatprep.subr.mxu0 0.0
  %249 = vmatpush2.msra.mxu0 0.0
  %250 = vmatprep.subr.mxu0 0.0
  %251 = vmatpush2.msra.mxu0 0.0
  %252 = vmatprep.subr.mxu0 0.0
  %253 = vmatpush2.msra.mxu0 0.0
  %254 = vmatprep.subr.mxu0 0.0
  %255 = vmatpush2.msra.mxu0 0.0
  %256 = vmatprep.subr.mxu0 0.0
  %257 = vmatpush2.msra.mxu0 0.0
  %258 = vmatprep.subr.mxu0 0.0
  %259 = vmatpush2.msra.mxu0 0.0
  %260 = vmatprep.subr.mxu0 0.0
  %261 = vmatpush2.msra.mxu0 0.0
  %262 = vmatprep.subr.mxu0 0.0
  %263 = vmatpush2.msra.mxu0 0.0
  %264 = vmatprep.subr.mxu0 0.0
  %265 = vmatpush2.msra.mxu0 0.0
  %266 = vmatprep.subr.mxu0 0.0
  %267 = vmatpush2.msra.mxu0 0.0
  %268 = vmatprep.subr.mxu0 0.0
  %269 = vmatpush2.msra.mxu0 0.0
  %270 = vmatprep.mubr.f32.mxu0 0.0
  %v271 = vand.u32 %v74, 4294901760
  %272 = vmatmul.mubr.f32.gmra.mxu0 %v271
  %v273 = vpop.f32.mrf.mxu0
  %v274 = vadd.f32 %v163, %v273
  %v275 = vpop.f32.mrf.mxu0
  %276 = vmatprep.mubr.f32.mxu0 0.0
  %v277 = vand.u32 %v77, 4294901760
  %278 = vmatmul.mubr.f32.gmra.mxu0 %v277
  %v279 = vpop.f32.mrf.mxu0
  %v280 = vadd.f32 %v173, %v279
  %v281 = vpop.f32.mrf.mxu0
  %282 = vmatprep.mubr.f32.mxu0 0.0
  %v283 = vand.u32 %v80, 4294901760
  %284 = vmatmul.mubr.f32.gmra.mxu0 %v283
  %v285 = vpop.f32.mrf.mxu0
  %v286 = vadd.f32 %v183, %v285
  %v287 = vpop.f32.mrf.mxu0
  %288 = vmatprep.mubr.f32.mxu0 0.0
  %v289 = vand.u32 %v83, 4294901760
  %290 = vmatmul.mubr.f32.gmra.mxu0 %v289
  %v291 = vpop.f32.mrf.mxu0
  %v292 = vadd.f32 %v193, %v291
  %v293 = vpop.f32.mrf.mxu0
  %294 = vdwg.mxu0
  %295 = vmatprep.subr.mxu0 0.0
  %296 = vmatpush1.msra.mxu0 0.0
  %297 = vmatprep.subr.mxu0 0.0
  %298 = vmatpush1.msra.mxu0 0.0
  %299 = vmatprep.subr.mxu0 0.0
  %300 = vmatpush1.msra.mxu0 0.0
  %301 = vmatprep.subr.mxu0 0.0
  %302 = vmatpush1.msra.mxu0 0.0
  %303 = vmatprep.subr.mxu0 0.0
  %304 = vmatpush1.msra.mxu0 0.0
  %305 = vmatprep.subr.mxu0 0.0
  %306 = vmatpush1.msra.mxu0 0.0
  %307 = vmatprep.subr.mxu0 0.0
  %308 = vmatpush1.msra.mxu0 0.0
  %309 = vmatprep.subr.mxu0 0.0
  %310 = vmatpush1.msra.mxu0 0.0
  %311 = vmatprep.subr.mxu0 0.0
  %312 = vmatpush1.msra.mxu0 0.0
  %313 = vmatprep.subr.mxu0 0.0
  %314 = vmatpush1.msra.mxu0 0.0
  %315 = vmatprep.subr.mxu0 0.0
  %316 = vmatpush1.msra.mxu0 0.0
  %317 = vmatprep.subr.mxu0 0.0
  %318 = vmatpush1.msra.mxu0 0.0
  %319 = vmatprep.subr.mxu0 0.0
  %320 = vmatpush1.msra.mxu0 0.0
  %321 = vmatprep.subr.mxu0 0.0
  %322 = vmatpush1.msra.mxu0 0.0
  %323 = vmatprep.subr.mxu0 0.0
  %v324 = vand.u32 %v87, 4294901760
  %v325 = vsub.f32 %v87, %v324
  %326 = vmatpush1.msra.mxu0 %v325
  %327 = vmatprep.subr.mxu0 0.0
  %v328 = vand.u32 %v65, 4294901760
  %v329 = vsub.f32 %v65, %v328
  %330 = vmatpush1.msra.mxu0 %v329
  %331 = vmatprep.subr.mxu0 0.0
  %332 = vmatpush2.msra.mxu0 0.0
  %333 = vmatprep.subr.mxu0 0.0
  %334 = vmatpush2.msra.mxu0 0.0
  %335 = vmatprep.subr.mxu0 0.0
  %336 = vmatpush2.msra.mxu0 0.0
  %337 = vmatprep.subr.mxu0 0.0
  %338 = vmatpush2.msra.mxu0 0.0
  %339 = vmatprep.subr.mxu0 0.0
  %340 = vmatpush2.msra.mxu0 0.0
  %341 = vmatprep.subr.mxu0 0.0
  %342 = vmatpush2.msra.mxu0 0.0
  %343 = vmatprep.subr.mxu0 0.0
  %344 = vmatpush2.msra.mxu0 0.0
  %345 = vmatprep.subr.mxu0 0.0
  %346 = vmatpush2.msra.mxu0 0.0
  %347 = vmatprep.subr.mxu0 0.0
  %348 = vmatpush2.msra.mxu0 0.0
  %349 = vmatprep.subr.mxu0 0.0
  %350 = vmatpush2.msra.mxu0 0.0
  %351 = vmatprep.subr.mxu0 0.0
  %352 = vmatpush2.msra.mxu0 0.0
  %353 = vmatprep.subr.mxu0 0.0
  %354 = vmatpush2.msra.mxu0 0.0
  %355 = vmatprep.subr.mxu0 0.0
  %356 = vmatpush2.msra.mxu0 0.0
  %357 = vmatprep.subr.mxu0 0.0
  %358 = vmatpush2.msra.mxu0 0.0
  %359 = vmatprep.subr.mxu0 0.0
  %360 = vmatpush2.msra.mxu0 0.0
  %361 = vmatprep.subr.mxu0 0.0
  %362 = vmatpush2.msra.mxu0 0.0
  %363 = vmatprep.mubr.f32.mxu0 0.0
  %v364 = vand.u32 %v74, 4294901760
  %v365 = vsub.f32 %v74, %v364
  %366 = vmatmul.mubr.f32.gmra.mxu0 %v365
  %v367 = vpop.f32.mrf.mxu0
  %v368 = vadd.f32 %v274, %v367
  %v369 = vpop.f32.mrf.mxu0
  %370 = vmatprep.mubr.f32.mxu0 0.0
  %v371 = vand.u32 %v77, 4294901760
  %v372 = vsub.f32 %v77, %v371
  %373 = vmatmul.mubr.f32.gmra.mxu0 %v372
  %v374 = vpop.f32.mrf.mxu0
  %v375 = vadd.f32 %v280, %v374
  %v376 = vpop.f32.mrf.mxu0
  %377 = vmatprep.mubr.f32.mxu0 0.0
  %v378 = vand.u32 %v80, 4294901760
  %v379 = vsub.f32 %v80, %v378
  %380 = vmatmul.mubr.f32.gmra.mxu0 %v379
  %v381 = vpop.f32.mrf.mxu0
  %v382 = vadd.f32 %v286, %v381
  %v383 = vpop.f32.mrf.mxu0
  %384 = vmatprep.mubr.f32.mxu0 0.0
  %v385 = vand.u32 %v83, 4294901760
  %v386 = vsub.f32 %v83, %v385
  %387 = vmatmul.mubr.f32.gmra.mxu0 %v386
  %v388 = vpop.f32.mrf.mxu0
  %v389 = vadd.f32 %v292, %v388
  %v390 = vpop.f32.mrf.mxu0
  %391 = vdwg.mxu0
  %392 = vmatprep.subr.mxu0 0.0
  %393 = vmatpush1.msra.mxu0 0.0
  %394 = vmatprep.subr.mxu0 0.0
  %395 = vmatpush1.msra.mxu0 0.0
  %396 = vmatprep.subr.mxu0 0.0
  %397 = vmatpush1.msra.mxu0 0.0
  %398 = vmatprep.subr.mxu0 0.0
  %399 = vmatpush1.msra.mxu0 0.0
  %400 = vmatprep.subr.mxu0 0.0
  %401 = vmatpush1.msra.mxu0 0.0
  %402 = vmatprep.subr.mxu0 0.0
  %403 = vmatpush1.msra.mxu0 0.0
  %404 = vmatprep.subr.mxu0 0.0
  %405 = vmatpush1.msra.mxu0 0.0
  %406 = vmatprep.subr.mxu0 0.0
  %407 = vmatpush1.msra.mxu0 0.0
  %408 = vmatprep.subr.mxu0 0.0
  %409 = vmatpush1.msra.mxu0 0.0
  %410 = vmatprep.subr.mxu0 0.0
  %411 = vmatpush1.msra.mxu0 0.0
  %412 = vmatprep.subr.mxu0 0.0
  %413 = vmatpush1.msra.mxu0 0.0
  %414 = vmatprep.subr.mxu0 0.0
  %415 = vmatpush1.msra.mxu0 0.0
  %416 = vmatprep.subr.mxu0 0.0
  %417 = vmatpush1.msra.mxu0 0.0
  %418 = vmatprep.subr.mxu0 0.0
  %419 = vmatpush1.msra.mxu0 0.0
  %420 = vmatprep.subr.mxu0 0.0
  %v421 = vand.u32 %v87, 4294901760
  %422 = vmatpush1.msra.mxu0 %v421
  %423 = vmatprep.subr.mxu0 0.0
  %v424 = vand.u32 %v65, 4294901760
  %425 = vmatpush1.msra.mxu0 %v424
  %426 = vmatprep.subr.mxu0 0.0
  %427 = vmatpush2.msra.mxu0 0.0
  %428 = vmatprep.subr.mxu0 0.0
  %429 = vmatpush2.msra.mxu0 0.0
  %430 = vmatprep.subr.mxu0 0.0
  %431 = vmatpush2.msra.mxu0 0.0
  %432 = vmatprep.subr.mxu0 0.0
  %433 = vmatpush2.msra.mxu0 0.0
  %434 = vmatprep.subr.mxu0 0.0
  %435 = vmatpush2.msra.mxu0 0.0
  %436 = vmatprep.subr.mxu0 0.0
  %437 = vmatpush2.msra.mxu0 0.0
  %438 = vmatprep.subr.mxu0 0.0
  %439 = vmatpush2.msra.mxu0 0.0
  %440 = vmatprep.subr.mxu0 0.0
  %441 = vmatpush2.msra.mxu0 0.0
  %442 = vmatprep.subr.mxu0 0.0
  %443 = vmatpush2.msra.mxu0 0.0
  %444 = vmatprep.subr.mxu0 0.0
  %445 = vmatpush2.msra.mxu0 0.0
  %446 = vmatprep.subr.mxu0 0.0
  %447 = vmatpush2.msra.mxu0 0.0
  %448 = vmatprep.subr.mxu0 0.0
  %449 = vmatpush2.msra.mxu0 0.0
  %450 = vmatprep.subr.mxu0 0.0
  %451 = vmatpush2.msra.mxu0 0.0
  %452 = vmatprep.subr.mxu0 0.0
  %453 = vmatpush2.msra.mxu0 0.0
  %454 = vmatprep.subr.mxu0 0.0
  %455 = vmatpush2.msra.mxu0 0.0
  %456 = vmatprep.subr.mxu0 0.0
  %457 = vmatpush2.msra.mxu0 0.0
  %458 = vmatprep.mubr.f32.mxu0 0.0
  %v459 = vand.u32 %v74, 4294901760
  %v460 = vsub.f32 %v74, %v459
  %v461 = vand.u32 %v460, 4294901760
  %462 = vmatmul.mubr.f32.gmra.mxu0 %v461
  %v463 = vpop.f32.mrf.mxu0
  %v464 = vadd.f32 %v368, %v463
  %v465 = vpop.f32.mrf.mxu0
  %466 = vmatprep.mubr.f32.mxu0 0.0
  %v467 = vand.u32 %v77, 4294901760
  %v468 = vsub.f32 %v77, %v467
  %v469 = vand.u32 %v468, 4294901760
  %470 = vmatmul.mubr.f32.gmra.mxu0 %v469
  %v471 = vpop.f32.mrf.mxu0
  %v472 = vadd.f32 %v375, %v471
  %v473 = vpop.f32.mrf.mxu0
  %474 = vmatprep.mubr.f32.mxu0 0.0
  %v475 = vand.u32 %v80, 4294901760
  %v476 = vsub.f32 %v80, %v475
  %v477 = vand.u32 %v476, 4294901760
  %478 = vmatmul.mubr.f32.gmra.mxu0 %v477
  %v479 = vpop.f32.mrf.mxu0
  %v480 = vadd.f32 %v382, %v479
  %v481 = vpop.f32.mrf.mxu0
  %482 = vmatprep.mubr.f32.mxu0 0.0
  %v483 = vand.u32 %v83, 4294901760
  %v484 = vsub.f32 %v83, %v483
  %v485 = vand.u32 %v484, 4294901760
  %486 = vmatmul.mubr.f32.gmra.mxu0 %v485
  %v487 = vpop.f32.mrf.mxu0
  %v488 = vadd.f32 %v389, %v487
  %v489 = vpop.f32.mrf.mxu0
  %490 = vdwg.mxu0
  %491 = vmatprep.subr.mxu0 0.0
  %492 = vmatpush1.msra.mxu0 0.0
  %493 = vmatprep.subr.mxu0 0.0
  %494 = vmatpush1.msra.mxu0 0.0
  %495 = vmatprep.subr.mxu0 0.0
  %496 = vmatpush1.msra.mxu0 0.0
  %497 = vmatprep.subr.mxu0 0.0
  %498 = vmatpush1.msra.mxu0 0.0
  %499 = vmatprep.subr.mxu0 0.0
  %500 = vmatpush1.msra.mxu0 0.0
  %501 = vmatprep.subr.mxu0 0.0
  %502 = vmatpush1.msra.mxu0 0.0
  %503 = vmatprep.subr.mxu0 0.0
  %504 = vmatpush1.msra.mxu0 0.0
  %505 = vmatprep.subr.mxu0 0.0
  %506 = vmatpush1.msra.mxu0 0.0
  %507 = vmatprep.subr.mxu0 0.0
  %508 = vmatpush1.msra.mxu0 0.0
  %509 = vmatprep.subr.mxu0 0.0
  %510 = vmatpush1.msra.mxu0 0.0
  %511 = vmatprep.subr.mxu0 0.0
  %512 = vmatpush1.msra.mxu0 0.0
  %513 = vmatprep.subr.mxu0 0.0
  %514 = vmatpush1.msra.mxu0 0.0
  %515 = vmatprep.subr.mxu0 0.0
  %516 = vmatpush1.msra.mxu0 0.0
  %517 = vmatprep.subr.mxu0 0.0
  %518 = vmatpush1.msra.mxu0 0.0
  %519 = vmatprep.subr.mxu0 0.0
  %v520 = vand.u32 %v87, 4294901760
  %v521 = vsub.f32 %v87, %v520
  %v522 = vand.u32 %v521, 4294901760
  %523 = vmatpush1.msra.mxu0 %v522
  %524 = vmatprep.subr.mxu0 0.0
  %v525 = vand.u32 %v65, 4294901760
  %v526 = vsub.f32 %v65, %v525
  %v527 = vand.u32 %v526, 4294901760
  %528 = vmatpush1.msra.mxu0 %v527
  %529 = vmatprep.subr.mxu0 0.0
  %530 = vmatpush2.msra.mxu0 0.0
  %531 = vmatprep.subr.mxu0 0.0
  %532 = vmatpush2.msra.mxu0 0.0
  %533 = vmatprep.subr.mxu0 0.0
  %534 = vmatpush2.msra.mxu0 0.0
  %535 = vmatprep.subr.mxu0 0.0
  %536 = vmatpush2.msra.mxu0 0.0
  %537 = vmatprep.subr.mxu0 0.0
  %538 = vmatpush2.msra.mxu0 0.0
  %539 = vmatprep.subr.mxu0 0.0
  %540 = vmatpush2.msra.mxu0 0.0
  %541 = vmatprep.subr.mxu0 0.0
  %542 = vmatpush2.msra.mxu0 0.0
  %543 = vmatprep.subr.mxu0 0.0
  %544 = vmatpush2.msra.mxu0 0.0
  %545 = vmatprep.subr.mxu0 0.0
  %546 = vmatpush2.msra.mxu0 0.0
  %547 = vmatprep.subr.mxu0 0.0
  %548 = vmatpush2.msra.mxu0 0.0
  %549 = vmatprep.subr.mxu0 0.0
  %550 = vmatpush2.msra.mxu0 0.0
  %551 = vmatprep.subr.mxu0 0.0
  %552 = vmatpush2.msra.mxu0 0.0
  %553 = vmatprep.subr.mxu0 0.0
  %554 = vmatpush2.msra.mxu0 0.0
  %555 = vmatprep.subr.mxu0 0.0
  %556 = vmatpush2.msra.mxu0 0.0
  %557 = vmatprep.subr.mxu0 0.0
  %558 = vmatpush2.msra.mxu0 0.0
  %559 = vmatprep.subr.mxu0 0.0
  %560 = vmatpush2.msra.mxu0 0.0
  %561 = vmatprep.mubr.f32.mxu0 0.0
  %v562 = vand.u32 %v74, 4294901760
  %563 = vmatmul.mubr.f32.gmra.mxu0 %v562
  %v564 = vpop.f32.mrf.mxu0
  %v565 = vadd.f32 %v464, %v564
  %v566 = vpop.f32.mrf.mxu0
  %567 = vmatprep.mubr.f32.mxu0 0.0
  %v568 = vand.u32 %v77, 4294901760
  %569 = vmatmul.mubr.f32.gmra.mxu0 %v568
  %v570 = vpop.f32.mrf.mxu0
  %v571 = vadd.f32 %v472, %v570
  %v572 = vpop.f32.mrf.mxu0
  %573 = vmatprep.mubr.f32.mxu0 0.0
  %v574 = vand.u32 %v80, 4294901760
  %575 = vmatmul.mubr.f32.gmra.mxu0 %v574
  %v576 = vpop.f32.mrf.mxu0
  %v577 = vadd.f32 %v480, %v576
  %v578 = vpop.f32.mrf.mxu0
  %579 = vmatprep.mubr.f32.mxu0 0.0
  %v580 = vand.u32 %v83, 4294901760
  %581 = vmatmul.mubr.f32.gmra.mxu0 %v580
  %v582 = vpop.f32.mrf.mxu0
  %v583 = vadd.f32 %v488, %v582
  %v584 = vpop.f32.mrf.mxu0
  %585 = vdwg.mxu0
  %586 = vmatprep.subr.mxu0 0.0
  %587 = vmatpush1.msra.mxu0 0.0
  %588 = vmatprep.subr.mxu0 0.0
  %589 = vmatpush1.msra.mxu0 0.0
  %590 = vmatprep.subr.mxu0 0.0
  %591 = vmatpush1.msra.mxu0 0.0
  %592 = vmatprep.subr.mxu0 0.0
  %593 = vmatpush1.msra.mxu0 0.0
  %594 = vmatprep.subr.mxu0 0.0
  %595 = vmatpush1.msra.mxu0 0.0
  %596 = vmatprep.subr.mxu0 0.0
  %597 = vmatpush1.msra.mxu0 0.0
  %598 = vmatprep.subr.mxu0 0.0
  %599 = vmatpush1.msra.mxu0 0.0
  %600 = vmatprep.subr.mxu0 0.0
  %601 = vmatpush1.msra.mxu0 0.0
  %602 = vmatprep.subr.mxu0 0.0
  %603 = vmatpush1.msra.mxu0 0.0
  %604 = vmatprep.subr.mxu0 0.0
  %605 = vmatpush1.msra.mxu0 0.0
  %606 = vmatprep.subr.mxu0 0.0
  %607 = vmatpush1.msra.mxu0 0.0
  %608 = vmatprep.subr.mxu0 0.0
  %609 = vmatpush1.msra.mxu0 0.0
  %610 = vmatprep.subr.mxu0 0.0
  %611 = vmatpush1.msra.mxu0 0.0
  %612 = vmatprep.subr.mxu0 0.0
  %613 = vmatpush1.msra.mxu0 0.0
  %614 = vmatprep.subr.mxu0 0.0
  %v615 = vand.u32 %v87, 4294901760
  %616 = vmatpush1.msra.mxu0 %v615
  %617 = vmatprep.subr.mxu0 0.0
  %v618 = vand.u32 %v65, 4294901760
  %619 = vmatpush1.msra.mxu0 %v618
  %620 = vmatprep.subr.mxu0 0.0
  %621 = vmatpush2.msra.mxu0 0.0
  %622 = vmatprep.subr.mxu0 0.0
  %623 = vmatpush2.msra.mxu0 0.0
  %624 = vmatprep.subr.mxu0 0.0
  %625 = vmatpush2.msra.mxu0 0.0
  %626 = vmatprep.subr.mxu0 0.0
  %627 = vmatpush2.msra.mxu0 0.0
  %628 = vmatprep.subr.mxu0 0.0
  %629 = vmatpush2.msra.mxu0 0.0
  %630 = vmatprep.subr.mxu0 0.0
  %631 = vmatpush2.msra.mxu0 0.0
  %632 = vmatprep.subr.mxu0 0.0
  %633 = vmatpush2.msra.mxu0 0.0
  %634 = vmatprep.subr.mxu0 0.0
  %635 = vmatpush2.msra.mxu0 0.0
  %636 = vmatprep.subr.mxu0 0.0
  %637 = vmatpush2.msra.mxu0 0.0
  %638 = vmatprep.subr.mxu0 0.0
  %639 = vmatpush2.msra.mxu0 0.0
  %640 = vmatprep.subr.mxu0 0.0
  %641 = vmatpush2.msra.mxu0 0.0
  %642 = vmatprep.subr.mxu0 0.0
  %643 = vmatpush2.msra.mxu0 0.0
  %644 = vmatprep.subr.mxu0 0.0
  %645 = vmatpush2.msra.mxu0 0.0
  %646 = vmatprep.subr.mxu0 0.0
  %647 = vmatpush2.msra.mxu0 0.0
  %648 = vmatprep.subr.mxu0 0.0
  %649 = vmatpush2.msra.mxu0 0.0
  %650 = vmatprep.subr.mxu0 0.0
  %651 = vmatpush2.msra.mxu0 0.0
  %652 = vmatprep.mubr.f32.mxu0 0.0
  %v653 = vand.u32 %v74, 4294901760
  %654 = vmatmul.mubr.f32.gmra.mxu0 %v653
  %v655 = vpop.f32.mrf.mxu0
  %v656 = vadd.f32 %v565, %v655
  %v657 = vpop.f32.mrf.mxu0
  %658 = vmatprep.mubr.f32.mxu0 0.0
  %v659 = vand.u32 %v77, 4294901760
  %660 = vmatmul.mubr.f32.gmra.mxu0 %v659
  %v661 = vpop.f32.mrf.mxu0
  %v662 = vadd.f32 %v571, %v661
  %v663 = vpop.f32.mrf.mxu0
  %664 = vmatprep.mubr.f32.mxu0 0.0
  %v665 = vand.u32 %v80, 4294901760
  %666 = vmatmul.mubr.f32.gmra.mxu0 %v665
  %v667 = vpop.f32.mrf.mxu0
  %v668 = vadd.f32 %v577, %v667
  %v669 = vpop.f32.mrf.mxu0
  %670 = vmatprep.mubr.f32.mxu0 0.0
  %v671 = vand.u32 %v83, 4294901760
  %672 = vmatmul.mubr.f32.gmra.mxu0 %v671
  %v673 = vpop.f32.mrf.mxu0
  %v674 = vadd.f32 %v583, %v673
  %v675 = vpop.f32.mrf.mxu0
  %676 = vdwg.mxu0
  %v677 = vmax.f32 %v656, 0.0
  %v678 = vmax.f32 %v662, 0.0
  %v679 = vmax.f32 %v668, 0.0
  %v680 = vmax.f32 %v674, 0.0
  %681 = vst.msk [vmem:[#allocation2] sm:$0xff] %vm60, %v677
  %682 = vst.msk [vmem:[#allocation2 + $0x8] sm:$0xff] %vm60, %v678
  %683 = vst.msk [vmem:[#allocation2 + $0x10] sm:$0xff] %vm60, %v679
  %vm684 = vcmask 62464
  %685 = vst.msk [vmem:[#allocation2 + $0x18] sm:$0x3f] %vm684, %v680
  %v686 = vld [vmem:[#allocation2] ss:$2 sm:$0xff]
  %s687 = scalar_lea.vmem [#allocation2], 16
  %v688 = vld [vmem:[%s687] ss:$2 sm:$0x7f]
  %s689 = scalar_lea.vmem [#allocation2], 1
  %v690 = vld [vmem:[%s689] ss:$2 sm:$0xff]
  %s691 = scalar_lea.vmem [#allocation2], 17
  %v692 = vld [vmem:[%s691] ss:$2 sm:$0x7f]
  %v693 = vmax.f32 %v686, %v690
  %v694 = vmax.f32 %v688, %v692
  %695 = vst.msk [vmem:[#allocation3] sm:$0xff] %vm60, %v693
  %vm696 = vcmask 63488
  %697 = vst.msk [vmem:[#allocation3 + $0x8] sm:$0x7f] %vm696, %v694
  %v698 = vld [vmem:[#allocation3] sm:$0xff]
  %v699 = vld [vmem:[#allocation3 + $0x8] sm:$0x1f]
  %v700 = vld [vmem:[#allocation3 + $0x1] sm:$0xff]
  %v701 = vld [vmem:[#allocation3 + $0x9] sm:$0x1f]
  %v702 = vld [vmem:[#allocation3 + $0x2] sm:$0xff]
  %v703 = vld [vmem:[#allocation3 + $0xa] sm:$0x1f]
  %706 = vrot.lane.b32.xlu0 %v700, 8
  %v707 = vpop.permute.xlu0 %706
  %708 = vrot.lane.b32.xlu0 %v701, 8
  %v709 = vpop.permute.xlu0 %708
  %714 = vrot.lane.b32.xlu0 %v702, 16
  %v715 = vpop.permute.xlu0 %714
  %716 = vrot.lane.b32.xlu0 %v703, 16
  %v717 = vpop.permute.xlu0 %716
  %v720 = vsel %vm60, %v698, %v707
  %v721 = vsel %vm60, %v699, %v709
  %vm722 = vcmask 130048
  %v723 = vsel %vm722, %v720, %v715
  %v724 = vsel %vm722, %v721, %v717
  %v725 = vld [vmem:[%s1 + $0x18] sm:$0xff]
  %v726 = vld [vmem:[%s1 + $0x20] sm:$0xff]
  %v727 = vld [vmem:[%s1 + $0x28] sm:$0xff]
  %v728 = vld [vmem:[%s1 + $0x30] sm:$0x1]
  %v729 = vlaneseq
  %v730 = vshrl.u32 %v729, 7
  %v731 = vsub.s32 0, %v730
  %v732 = vrot.slane %v728, %v731
  %vm733 = vcmask 195584
  %v735 = vsel %vm733, %v723, 0
  %v738 = vsel %vm733, %v724, 0
  %740 = vmatprep.subr.mxu0 0.0
  %741 = vmatpush1.msra.mxu0 0.0
  %742 = vmatprep.subr.mxu0 0.0
  %743 = vmatpush1.msra.mxu0 0.0
  %744 = vmatprep.subr.mxu0 0.0
  %745 = vmatpush1.msra.mxu0 0.0
  %746 = vmatprep.subr.mxu0 0.0
  %747 = vmatpush1.msra.mxu0 0.0
  %748 = vmatprep.subr.mxu0 0.0
  %749 = vmatpush1.msra.mxu0 0.0
  %750 = vmatprep.subr.mxu0 0.0
  %751 = vmatpush1.msra.mxu0 0.0
  %752 = vmatprep.subr.mxu0 0.0
  %753 = vmatpush1.msra.mxu0 0.0
  %754 = vmatprep.subr.mxu0 0.0
  %755 = vmatpush1.msra.mxu0 0.0
  %756 = vmatprep.subr.mxu0 0.0
  %757 = vmatpush1.msra.mxu0 0.0
  %758 = vmatprep.subr.mxu0 0.0
  %759 = vmatpush1.msra.mxu0 0.0
  %760 = vmatprep.subr.mxu0 0.0
  %761 = vmatpush1.msra.mxu0 0.0
  %762 = vmatprep.subr.mxu0 0.0
  %763 = vmatpush1.msra.mxu0 0.0
  %764 = vmatprep.subr.mxu0 0.0
  %765 = vmatpush1.msra.mxu0 0.0
  %766 = vmatprep.subr.mxu0 0.0
  %v767 = vand.u32 %v727, 4294901760
  %768 = vmatpush1.msra.mxu0 %v767
  %769 = vmatprep.subr.mxu0 0.0
  %v770 = vand.u32 %v726, 4294901760
  %771 = vmatpush1.msra.mxu0 %v770
  %772 = vmatprep.subr.mxu0 0.0
  %v773 = vand.u32 %v725, 4294901760
  %774 = vmatpush1.msra.mxu0 %v773
  %775 = vmatprep.subr.mxu0 0.0
  %776 = vmatpush2.msra.mxu0 0.0
  %777 = vmatprep.subr.mxu0 0.0
  %778 = vmatpush2.msra.mxu0 0.0
  %779 = vmatprep.subr.mxu0 0.0
  %780 = vmatpush2.msra.mxu0 0.0
  %781 = vmatprep.subr.mxu0 0.0
  %782 = vmatpush2.msra.mxu0 0.0
  %783 = vmatprep.subr.mxu0 0.0
  %784 = vmatpush2.msra.mxu0 0.0
  %785 = vmatprep.subr.mxu0 0.0
  %786 = vmatpush2.msra.mxu0 0.0
  %787 = vmatprep.subr.mxu0 0.0
  %788 = vmatpush2.msra.mxu0 0.0
  %789 = vmatprep.subr.mxu0 0.0
  %790 = vmatpush2.msra.mxu0 0.0
  %791 = vmatprep.subr.mxu0 0.0
  %792 = vmatpush2.msra.mxu0 0.0
  %793 = vmatprep.subr.mxu0 0.0
  %794 = vmatpush2.msra.mxu0 0.0
  %795 = vmatprep.subr.mxu0 0.0
  %796 = vmatpush2.msra.mxu0 0.0
  %797 = vmatprep.subr.mxu0 0.0
  %798 = vmatpush2.msra.mxu0 0.0
  %799 = vmatprep.subr.mxu0 0.0
  %800 = vmatpush2.msra.mxu0 0.0
  %801 = vmatprep.subr.mxu0 0.0
  %802 = vmatpush2.msra.mxu0 0.0
  %803 = vmatprep.subr.mxu0 0.0
  %804 = vmatpush2.msra.mxu0 0.0
  %805 = vmatprep.subr.mxu0 0.0
  %806 = vmatpush2.msra.mxu0 0.0
  %807 = vmatprep.mubr.f32.mxu0 0.0
  %v808 = vand.u32 %v735, 4294901760
  %v809 = vsub.f32 %v735, %v808
  %v810 = vand.u32 %v809, 4294901760
  %v811 = vsub.f32 %v809, %v810
  %v812 = vand.u32 %v811, 4294901760
  %813 = vmatmul.mubr.f32.gmra.mxu0 %v812
  %v814 = vpop.f32.mrf.mxu0
  %v815 = vadd.f32 %v732, %v814
  %v816 = vpop.f32.mrf.mxu0
  %817 = vmatprep.mubr.f32.mxu0 0.0
  %v818 = vand.u32 %v738, 4294901760
  %v819 = vsub.f32 %v738, %v818
  %v820 = vand.u32 %v819, 4294901760
  %v821 = vsub.f32 %v819, %v820
  %v822 = vand.u32 %v821, 4294901760
  %823 = vmatmul.mubr.f32.gmra.mxu0 %v822
  %v824 = vpop.f32.mrf.mxu0
  %v825 = vadd.f32 %v732, %v824
  %v826 = vpop.f32.mrf.mxu0
  %827 = vdwg.mxu0
  %828 = vmatprep.subr.mxu0 0.0
  %829 = vmatpush1.msra.mxu0 0.0
  %830 = vmatprep.subr.mxu0 0.0
  %831 = vmatpush1.msra.mxu0 0.0
  %832 = vmatprep.subr.mxu0 0.0
  %833 = vmatpush1.msra.mxu0 0.0
  %834 = vmatprep.subr.mxu0 0.0
  %835 = vmatpush1.msra.mxu0 0.0
  %836 = vmatprep.subr.mxu0 0.0
  %837 = vmatpush1.msra.mxu0 0.0
  %838 = vmatprep.subr.mxu0 0.0
  %839 = vmatpush1.msra.mxu0 0.0
  %840 = vmatprep.subr.mxu0 0.0
  %841 = vmatpush1.msra.mxu0 0.0
  %842 = vmatprep.subr.mxu0 0.0
  %843 = vmatpush1.msra.mxu0 0.0
  %844 = vmatprep.subr.mxu0 0.0
  %845 = vmatpush1.msra.mxu0 0.0
  %846 = vmatprep.subr.mxu0 0.0
  %847 = vmatpush1.msra.mxu0 0.0
  %848 = vmatprep.subr.mxu0 0.0
  %849 = vmatpush1.msra.mxu0 0.0
  %850 = vmatprep.subr.mxu0 0.0
  %851 = vmatpush1.msra.mxu0 0.0
  %852 = vmatprep.subr.mxu0 0.0
  %853 = vmatpush1.msra.mxu0 0.0
  %854 = vmatprep.subr.mxu0 0.0
  %v855 = vand.u32 %v727, 4294901760
  %v856 = vsub.f32 %v727, %v855
  %v857 = vand.u32 %v856, 4294901760
  %v858 = vsub.f32 %v856, %v857
  %v859 = vand.u32 %v858, 4294901760
  %860 = vmatpush1.msra.mxu0 %v859
  %861 = vmatprep.subr.mxu0 0.0
  %v862 = vand.u32 %v726, 4294901760
  %v863 = vsub.f32 %v726, %v862
  %v864 = vand.u32 %v863, 4294901760
  %v865 = vsub.f32 %v863, %v864
  %v866 = vand.u32 %v865, 4294901760
  %867 = vmatpush1.msra.mxu0 %v866
  %868 = vmatprep.subr.mxu0 0.0
  %v869 = vand.u32 %v725, 4294901760
  %v870 = vsub.f32 %v725, %v869
  %v871 = vand.u32 %v870, 4294901760
  %v872 = vsub.f32 %v870, %v871
  %v873 = vand.u32 %v872, 4294901760
  %874 = vmatpush1.msra.mxu0 %v873
  %875 = vmatprep.subr.mxu0 0.0
  %876 = vmatpush2.msra.mxu0 0.0
  %877 = vmatprep.subr.mxu0 0.0
  %878 = vmatpush2.msra.mxu0 0.0
  %879 = vmatprep.subr.mxu0 0.0
  %880 = vmatpush2.msra.mxu0 0.0
  %881 = vmatprep.subr.mxu0 0.0
  %882 = vmatpush2.msra.mxu0 0.0
  %883 = vmatprep.subr.mxu0 0.0
  %884 = vmatpush2.msra.mxu0 0.0
  %885 = vmatprep.subr.mxu0 0.0
  %886 = vmatpush2.msra.mxu0 0.0
  %887 = vmatprep.subr.mxu0 0.0
  %888 = vmatpush2.msra.mxu0 0.0
  %889 = vmatprep.subr.mxu0 0.0
  %890 = vmatpush2.msra.mxu0 0.0
  %891 = vmatprep.subr.mxu0 0.0
  %892 = vmatpush2.msra.mxu0 0.0
  %893 = vmatprep.subr.mxu0 0.0
  %894 = vmatpush2.msra.mxu0 0.0
  %895 = vmatprep.subr.mxu0 0.0
  %896 = vmatpush2.msra.mxu0 0.0
  %897 = vmatprep.subr.mxu0 0.0
  %898 = vmatpush2.msra.mxu0 0.0
  %899 = vmatprep.subr.mxu0 0.0
  %900 = vmatpush2.msra.mxu0 0.0
  %901 = vmatprep.subr.mxu0 0.0
  %902 = vmatpush2.msra.mxu0 0.0
  %903 = vmatprep.subr.mxu0 0.0
  %904 = vmatpush2.msra.mxu0 0.0
  %905 = vmatprep.subr.mxu0 0.0
  %906 = vmatpush2.msra.mxu0 0.0
  %907 = vmatprep.mubr.f32.mxu0 0.0
  %v908 = vand.u32 %v735, 4294901760
  %909 = vmatmul.mubr.f32.gmra.mxu0 %v908
  %v910 = vpop.f32.mrf.mxu0
  %v911 = vadd.f32 %v815, %v910
  %v912 = vpop.f32.mrf.mxu0
  %913 = vmatprep.mubr.f32.mxu0 0.0
  %v914 = vand.u32 %v738, 4294901760
  %915 = vmatmul.mubr.f32.gmra.mxu0 %v914
  %v916 = vpop.f32.mrf.mxu0
  %v917 = vadd.f32 %v825, %v916
  %v918 = vpop.f32.mrf.mxu0
  %919 = vdwg.mxu0
  %920 = vmatprep.subr.mxu0 0.0
  %921 = vmatpush1.msra.mxu0 0.0
  %922 = vmatprep.subr.mxu0 0.0
  %923 = vmatpush1.msra.mxu0 0.0
  %924 = vmatprep.subr.mxu0 0.0
  %925 = vmatpush1.msra.mxu0 0.0
  %926 = vmatprep.subr.mxu0 0.0
  %927 = vmatpush1.msra.mxu0 0.0
  %928 = vmatprep.subr.mxu0 0.0
  %929 = vmatpush1.msra.mxu0 0.0
  %930 = vmatprep.subr.mxu0 0.0
  %931 = vmatpush1.msra.mxu0 0.0
  %932 = vmatprep.subr.mxu0 0.0
  %933 = vmatpush1.msra.mxu0 0.0
  %934 = vmatprep.subr.mxu0 0.0
  %935 = vmatpush1.msra.mxu0 0.0
  %936 = vmatprep.subr.mxu0 0.0
  %937 = vmatpush1.msra.mxu0 0.0
  %938 = vmatprep.subr.mxu0 0.0
  %939 = vmatpush1.msra.mxu0 0.0
  %940 = vmatprep.subr.mxu0 0.0
  %941 = vmatpush1.msra.mxu0 0.0
  %942 = vmatprep.subr.mxu0 0.0
  %943 = vmatpush1.msra.mxu0 0.0
  %944 = vmatprep.subr.mxu0 0.0
  %945 = vmatpush1.msra.mxu0 0.0
  %946 = vmatprep.subr.mxu0 0.0
  %v947 = vand.u32 %v727, 4294901760
  %v948 = vsub.f32 %v727, %v947
  %949 = vmatpush1.msra.mxu0 %v948
  %950 = vmatprep.subr.mxu0 0.0
  %v951 = vand.u32 %v726, 4294901760
  %v952 = vsub.f32 %v726, %v951
  %953 = vmatpush1.msra.mxu0 %v952
  %954 = vmatprep.subr.mxu0 0.0
  %v955 = vand.u32 %v725, 4294901760
  %v956 = vsub.f32 %v725, %v955
  %957 = vmatpush1.msra.mxu0 %v956
  %958 = vmatprep.subr.mxu0 0.0
  %959 = vmatpush2.msra.mxu0 0.0
  %960 = vmatprep.subr.mxu0 0.0
  %961 = vmatpush2.msra.mxu0 0.0
  %962 = vmatprep.subr.mxu0 0.0
  %963 = vmatpush2.msra.mxu0 0.0
  %964 = vmatprep.subr.mxu0 0.0
  %965 = vmatpush2.msra.mxu0 0.0
  %966 = vmatprep.subr.mxu0 0.0
  %967 = vmatpush2.msra.mxu0 0.0
  %968 = vmatprep.subr.mxu0 0.0
  %969 = vmatpush2.msra.mxu0 0.0
  %970 = vmatprep.subr.mxu0 0.0
  %971 = vmatpush2.msra.mxu0 0.0
  %972 = vmatprep.subr.mxu0 0.0
  %973 = vmatpush2.msra.mxu0 0.0
  %974 = vmatprep.subr.mxu0 0.0
  %975 = vmatpush2.msra.mxu0 0.0
  %976 = vmatprep.subr.mxu0 0.0
  %977 = vmatpush2.msra.mxu0 0.0
  %978 = vmatprep.subr.mxu0 0.0
  %979 = vmatpush2.msra.mxu0 0.0
  %980 = vmatprep.subr.mxu0 0.0
  %981 = vmatpush2.msra.mxu0 0.0
  %982 = vmatprep.subr.mxu0 0.0
  %983 = vmatpush2.msra.mxu0 0.0
  %984 = vmatprep.subr.mxu0 0.0
  %985 = vmatpush2.msra.mxu0 0.0
  %986 = vmatprep.subr.mxu0 0.0
  %987 = vmatpush2.msra.mxu0 0.0
  %988 = vmatprep.subr.mxu0 0.0
  %989 = vmatpush2.msra.mxu0 0.0
  %990 = vmatprep.mubr.f32.mxu0 0.0
  %v991 = vand.u32 %v735, 4294901760
  %v992 = vsub.f32 %v735, %v991
  %993 = vmatmul.mubr.f32.gmra.mxu0 %v992
  %v994 = vpop.f32.mrf.mxu0
  %v995 = vadd.f32 %v911, %v994
  %v996 = vpop.f32.mrf.mxu0
  %997 = vmatprep.mubr.f32.mxu0 0.0
  %v998 = vand.u32 %v738, 4294901760
  %v999 = vsub.f32 %v738, %v998
  %1000 = vmatmul.mubr.f32.gmra.mxu0 %v999
  %v1001 = vpop.f32.mrf.mxu0
  %v1002 = vadd.f32 %v917, %v1001
  %v1003 = vpop.f32.mrf.mxu0
  %1004 = vdwg.mxu0
  %1005 = vmatprep.subr.mxu0 0.0
  %1006 = vmatpush1.msra.mxu0 0.0
  %1007 = vmatprep.subr.mxu0 0.0
  %1008 = vmatpush1.msra.mxu0 0.0
  %1009 = vmatprep.subr.mxu0 0.0
  %1010 = vmatpush1.msra.mxu0 0.0
  %1011 = vmatprep.subr.mxu0 0.0
  %1012 = vmatpush1.msra.mxu0 0.0
  %1013 = vmatprep.subr.mxu0 0.0
  %1014 = vmatpush1.msra.mxu0 0.0
  %1015 = vmatprep.subr.mxu0 0.0
  %1016 = vmatpush1.msra.mxu0 0.0
  %1017 = vmatprep.subr.mxu0 0.0
  %1018 = vmatpush1.msra.mxu0 0.0
  %1019 = vmatprep.subr.mxu0 0.0
  %1020 = vmatpush1.msra.mxu0 0.0
  %1021 = vmatprep.subr.mxu0 0.0
  %1022 = vmatpush1.msra.mxu0 0.0
  %1023 = vmatprep.subr.mxu0 0.0
  %1024 = vmatpush1.msra.mxu0 0.0
  %1025 = vmatprep.subr.mxu0 0.0
  %1026 = vmatpush1.msra.mxu0 0.0
  %1027 = vmatprep.subr.mxu0 0.0
  %1028 = vmatpush1.msra.mxu0 0.0
  %1029 = vmatprep.subr.mxu0 0.0
  %1030 = vmatpush1.msra.mxu0 0.0
  %1031 = vmatprep.subr.mxu0 0.0
  %v1032 = vand.u32 %v727, 4294901760
  %1033 = vmatpush1.msra.mxu0 %v1032
  %1034 = vmatprep.subr.mxu0 0.0
  %v1035 = vand.u32 %v726, 4294901760
  %1036 = vmatpush1.msra.mxu0 %v1035
  %1037 = vmatprep.subr.mxu0 0.0
  %v1038 = vand.u32 %v725, 4294901760
  %1039 = vmatpush1.msra.mxu0 %v1038
  %1040 = vmatprep.subr.mxu0 0.0
  %1041 = vmatpush2.msra.mxu0 0.0
  %1042 = vmatprep.subr.mxu0 0.0
  %1043 = vmatpush2.msra.mxu0 0.0
  %1044 = vmatprep.subr.mxu0 0.0
  %1045 = vmatpush2.msra.mxu0 0.0
  %1046 = vmatprep.subr.mxu0 0.0
  %1047 = vmatpush2.msra.mxu0 0.0
  %1048 = vmatprep.subr.mxu0 0.0
  %1049 = vmatpush2.msra.mxu0 0.0
  %1050 = vmatprep.subr.mxu0 0.0
  %1051 = vmatpush2.msra.mxu0 0.0
  %1052 = vmatprep.subr.mxu0 0.0
  %1053 = vmatpush2.msra.mxu0 0.0
  %1054 = vmatprep.subr.mxu0 0.0
  %1055 = vmatpush2.msra.mxu0 0.0
  %1056 = vmatprep.subr.mxu0 0.0
  %1057 = vmatpush2.msra.mxu0 0.0
  %1058 = vmatprep.subr.mxu0 0.0
  %1059 = vmatpush2.msra.mxu0 0.0
  %1060 = vmatprep.subr.mxu0 0.0
  %1061 = vmatpush2.msra.mxu0 0.0
  %1062 = vmatprep.subr.mxu0 0.0
  %1063 = vmatpush2.msra.mxu0 0.0
  %1064 = vmatprep.subr.mxu0 0.0
  %1065 = vmatpush2.msra.mxu0 0.0
  %1066 = vmatprep.subr.mxu0 0.0
  %1067 = vmatpush2.msra.mxu0 0.0
  %1068 = vmatprep.subr.mxu0 0.0
  %1069 = vmatpush2.msra.mxu0 0.0
  %1070 = vmatprep.subr.mxu0 0.0
  %1071 = vmatpush2.msra.mxu0 0.0
  %1072 = vmatprep.mubr.f32.mxu0 0.0
  %v1073 = vand.u32 %v735, 4294901760
  %v1074 = vsub.f32 %v735, %v1073
  %v1075 = vand.u32 %v1074, 4294901760
  %1076 = vmatmul.mubr.f32.gmra.mxu0 %v1075
  %v1077 = vpop.f32.mrf.mxu0
  %v1078 = vadd.f32 %v995, %v1077
  %v1079 = vpop.f32.mrf.mxu0
  %1080 = vmatprep.mubr.f32.mxu0 0.0
  %v1081 = vand.u32 %v738, 4294901760
  %v1082 = vsub.f32 %v738, %v1081
  %v1083 = vand.u32 %v1082, 4294901760
  %1084 = vmatmul.mubr.f32.gmra.mxu0 %v1083
  %v1085 = vpop.f32.mrf.mxu0
  %v1086 = vadd.f32 %v1002, %v1085
  %v1087 = vpop.f32.mrf.mxu0
  %1088 = vdwg.mxu0
  %1089 = vmatprep.subr.mxu0 0.0
  %1090 = vmatpush1.msra.mxu0 0.0
  %1091 = vmatprep.subr.mxu0 0.0
  %1092 = vmatpush1.msra.mxu0 0.0
  %1093 = vmatprep.subr.mxu0 0.0
  %1094 = vmatpush1.msra.mxu0 0.0
  %1095 = vmatprep.subr.mxu0 0.0
  %1096 = vmatpush1.msra.mxu0 0.0
  %1097 = vmatprep.subr.mxu0 0.0
  %1098 = vmatpush1.msra.mxu0 0.0
  %1099 = vmatprep.subr.mxu0 0.0
  %1100 = vmatpush1.msra.mxu0 0.0
  %1101 = vmatprep.subr.mxu0 0.0
  %1102 = vmatpush1.msra.mxu0 0.0
  %1103 = vmatprep.subr.mxu0 0.0
  %1104 = vmatpush1.msra.mxu0 0.0
  %1105 = vmatprep.subr.mxu0 0.0
  %1106 = vmatpush1.msra.mxu0 0.0
  %1107 = vmatprep.subr.mxu0 0.0
  %1108 = vmatpush1.msra.mxu0 0.0
  %1109 = vmatprep.subr.mxu0 0.0
  %1110 = vmatpush1.msra.mxu0 0.0
  %1111 = vmatprep.subr.mxu0 0.0
  %1112 = vmatpush1.msra.mxu0 0.0
  %1113 = vmatprep.subr.mxu0 0.0
  %1114 = vmatpush1.msra.mxu0 0.0
  %1115 = vmatprep.subr.mxu0 0.0
  %v1116 = vand.u32 %v727, 4294901760
  %v1117 = vsub.f32 %v727, %v1116
  %v1118 = vand.u32 %v1117, 4294901760
  %1119 = vmatpush1.msra.mxu0 %v1118
  %1120 = vmatprep.subr.mxu0 0.0
  %v1121 = vand.u32 %v726, 4294901760
  %v1122 = vsub.f32 %v726, %v1121
  %v1123 = vand.u32 %v1122, 4294901760
  %1124 = vmatpush1.msra.mxu0 %v1123
  %1125 = vmatprep.subr.mxu0 0.0
  %v1126 = vand.u32 %v725, 4294901760
  %v1127 = vsub.f32 %v725, %v1126
  %v1128 = vand.u32 %v1127, 4294901760
  %1129 = vmatpush1.msra.mxu0 %v1128
  %1130 = vmatprep.subr.mxu0 0.0
  %1131 = vmatpush2.msra.mxu0 0.0
  %1132 = vmatprep.subr.mxu0 0.0
  %1133 = vmatpush2.msra.mxu0 0.0
  %1134 = vmatprep.subr.mxu0 0.0
  %1135 = vmatpush2.msra.mxu0 0.0
  %1136 = vmatprep.subr.mxu0 0.0
  %1137 = vmatpush2.msra.mxu0 0.0
  %1138 = vmatprep.subr.mxu0 0.0
  %1139 = vmatpush2.msra.mxu0 0.0
  %1140 = vmatprep.subr.mxu0 0.0
  %1141 = vmatpush2.msra.mxu0 0.0
  %1142 = vmatprep.subr.mxu0 0.0
  %1143 = vmatpush2.msra.mxu0 0.0
  %1144 = vmatprep.subr.mxu0 0.0
  %1145 = vmatpush2.msra.mxu0 0.0
  %1146 = vmatprep.subr.mxu0 0.0
  %1147 = vmatpush2.msra.mxu0 0.0
  %1148 = vmatprep.subr.mxu0 0.0
  %1149 = vmatpush2.msra.mxu0 0.0
  %1150 = vmatprep.subr.mxu0 0.0
  %1151 = vmatpush2.msra.mxu0 0.0
  %1152 = vmatprep.subr.mxu0 0.0
  %1153 = vmatpush2.msra.mxu0 0.0
  %1154 = vmatprep.subr.mxu0 0.0
  %1155 = vmatpush2.msra.mxu0 0.0
  %1156 = vmatprep.subr.mxu0 0.0
  %1157 = vmatpush2.msra.mxu0 0.0
  %1158 = vmatprep.subr.mxu0 0.0
  %1159 = vmatpush2.msra.mxu0 0.0
  %1160 = vmatprep.subr.mxu0 0.0
  %1161 = vmatpush2.msra.mxu0 0.0
  %1162 = vmatprep.mubr.f32.mxu0 0.0
  %v1163 = vand.u32 %v735, 4294901760
  %1164 = vmatmul.mubr.f32.gmra.mxu0 %v1163
  %v1165 = vpop.f32.mrf.mxu0
  %v1166 = vadd.f32 %v1078, %v1165
  %v1167 = vpop.f32.mrf.mxu0
  %1168 = vmatprep.mubr.f32.mxu0 0.0
  %v1169 = vand.u32 %v738, 4294901760
  %1170 = vmatmul.mubr.f32.gmra.mxu0 %v1169
  %v1171 = vpop.f32.mrf.mxu0
  %v1172 = vadd.f32 %v1086, %v1171
  %v1173 = vpop.f32.mrf.mxu0
  %1174 = vdwg.mxu0
  %1175 = vmatprep.subr.mxu0 0.0
  %1176 = vmatpush1.msra.mxu0 0.0
  %1177 = vmatprep.subr.mxu0 0.0
  %1178 = vmatpush1.msra.mxu0 0.0
  %1179 = vmatprep.subr.mxu0 0.0
  %1180 = vmatpush1.msra.mxu0 0.0
  %1181 = vmatprep.subr.mxu0 0.0
  %1182 = vmatpush1.msra.mxu0 0.0
  %1183 = vmatprep.subr.mxu0 0.0
  %1184 = vmatpush1.msra.mxu0 0.0
  %1185 = vmatprep.subr.mxu0 0.0
  %1186 = vmatpush1.msra.mxu0 0.0
  %1187 = vmatprep.subr.mxu0 0.0
  %1188 = vmatpush1.msra.mxu0 0.0
  %1189 = vmatprep.subr.mxu0 0.0
  %1190 = vmatpush1.msra.mxu0 0.0
  %1191 = vmatprep.subr.mxu0 0.0
  %1192 = vmatpush1.msra.mxu0 0.0
  %1193 = vmatprep.subr.mxu0 0.0
  %1194 = vmatpush1.msra.mxu0 0.0
  %1195 = vmatprep.subr.mxu0 0.0
  %1196 = vmatpush1.msra.mxu0 0.0
  %1197 = vmatprep.subr.mxu0 0.0
  %1198 = vmatpush1.msra.mxu0 0.0
  %1199 = vmatprep.subr.mxu0 0.0
  %1200 = vmatpush1.msra.mxu0 0.0
  %1201 = vmatprep.subr.mxu0 0.0
  %v1202 = vand.u32 %v727, 4294901760
  %1203 = vmatpush1.msra.mxu0 %v1202
  %1204 = vmatprep.subr.mxu0 0.0
  %v1205 = vand.u32 %v726, 4294901760
  %1206 = vmatpush1.msra.mxu0 %v1205
  %1207 = vmatprep.subr.mxu0 0.0
  %v1208 = vand.u32 %v725, 4294901760
  %1209 = vmatpush1.msra.mxu0 %v1208
  %1210 = vmatprep.subr.mxu0 0.0
  %1211 = vmatpush2.msra.mxu0 0.0
  %1212 = vmatprep.subr.mxu0 0.0
  %1213 = vmatpush2.msra.mxu0 0.0
  %1214 = vmatprep.subr.mxu0 0.0
  %1215 = vmatpush2.msra.mxu0 0.0
  %1216 = vmatprep.subr.mxu0 0.0
  %1217 = vmatpush2.msra.mxu0 0.0
  %1218 = vmatprep.subr.mxu0 0.0
  %1219 = vmatpush2.msra.mxu0 0.0
  %1220 = vmatprep.subr.mxu0 0.0
  %1221 = vmatpush2.msra.mxu0 0.0
  %1222 = vmatprep.subr.mxu0 0.0
  %1223 = vmatpush2.msra.mxu0 0.0
  %1224 = vmatprep.subr.mxu0 0.0
  %1225 = vmatpush2.msra.mxu0 0.0
  %1226 = vmatprep.subr.mxu0 0.0
  %1227 = vmatpush2.msra.mxu0 0.0
  %1228 = vmatprep.subr.mxu0 0.0
  %1229 = vmatpush2.msra.mxu0 0.0
  %1230 = vmatprep.subr.mxu0 0.0
  %1231 = vmatpush2.msra.mxu0 0.0
  %1232 = vmatprep.subr.mxu0 0.0
  %1233 = vmatpush2.msra.mxu0 0.0
  %1234 = vmatprep.subr.mxu0 0.0
  %1235 = vmatpush2.msra.mxu0 0.0
  %1236 = vmatprep.subr.mxu0 0.0
  %1237 = vmatpush2.msra.mxu0 0.0
  %1238 = vmatprep.subr.mxu0 0.0
  %1239 = vmatpush2.msra.mxu0 0.0
  %1240 = vmatprep.subr.mxu0 0.0
  %1241 = vmatpush2.msra.mxu0 0.0
  %1242 = vmatprep.mubr.f32.mxu0 0.0
  %v1243 = vand.u32 %v735, 4294901760
  %1244 = vmatmul.mubr.f32.gmra.mxu0 %v1243
  %v1245 = vpop.f32.mrf.mxu0
  %v1246 = vadd.f32 %v1166, %v1245
  %v1247 = vpop.f32.mrf.mxu0
  %1248 = vmatprep.mubr.f32.mxu0 0.0
  %v1249 = vand.u32 %v738, 4294901760
  %1250 = vmatmul.mubr.f32.gmra.mxu0 %v1249
  %v1251 = vpop.f32.mrf.mxu0
  %v1252 = vadd.f32 %v1172, %v1251
  %v1253 = vpop.f32.mrf.mxu0
  %1254 = vdwg.mxu0
  %v1255 = vmax.f32 %v1246, 0.0
  %v1256 = vmax.f32 %v1252, 0.0
  %1257 = vst.msk [vmem:[#allocation4] sm:$0xff] %vm722, 0.0
  %1258 = vst.msk [vmem:[#allocation4 + $0x8] sm:$0xff] %vm722, 0.0
  %1259 = vst.msk [vmem:[#allocation4] sm:$0xff] %vm722, %v1255
  %vm1260 = vcmask 126976
  %1261 = vst.msk [vmem:[#allocation4 + $0x8] sm:$0x1f] %vm1260, %v1256
  %v1262 = vld [vmem:[#allocation4] ss:$2 sm:$0xff]
  %s1263 = scalar_lea.vmem [#allocation4], 1
  %v1264 = vld [vmem:[%s1263] ss:$2 sm:$0xff]
  %v1265 = vmax.f32 %v1262, %v1264
  %v1266 = vld [vmem:[%s1 + $0x38] sm:$0xff]
  %v1267 = vld [vmem:[%s1 + $0x40] sm:$0x3]
  %v1268 = vld [vmem:[%s1 + $0x48] sm:$0x1]
  %v1269 = vmul.f32 %v1265, %v1266
  %v1271 = vsel %vm60, %v1267, 0
  %1273 = vmatprep.subr.mxu0 0.0
  %1274 = vmatpush1.msra.mxu0 0.0
  %1275 = vmatprep.subr.mxu0 0.0
  %1276 = vmatpush1.msra.mxu0 0.0
  %1277 = vmatprep.subr.mxu0 0.0
  %1278 = vmatpush1.msra.mxu0 0.0
  %1279 = vmatprep.subr.mxu0 0.0
  %1280 = vmatpush1.msra.mxu0 0.0
  %1281 = vmatprep.subr.mxu0 0.0
  %1282 = vmatpush1.msra.mxu0 0.0
  %1283 = vmatprep.subr.mxu0 0.0
  %1284 = vmatpush1.msra.mxu0 0.0
  %1285 = vmatprep.subr.mxu0 0.0
  %1286 = vmatpush1.msra.mxu0 0.0
  %1287 = vmatprep.subr.mxu0 0.0
  %1288 = vmatpush1.msra.mxu0 0.0
  %1289 = vmatprep.subr.mxu0 0.0
  %1290 = vmatpush1.msra.mxu0 0.0
  %1291 = vmatprep.subr.mxu0 0.0
  %1292 = vmatpush1.msra.mxu0 0.0
  %1293 = vmatprep.subr.mxu0 0.0
  %1294 = vmatpush1.msra.mxu0 0.0
  %1295 = vmatprep.subr.mxu0 0.0
  %1296 = vmatpush1.msra.mxu0 0.0
  %1297 = vmatprep.subr.mxu0 0.0
  %1298 = vmatpush1.msra.mxu0 0.0
  %1299 = vmatprep.subr.mxu0 0.0
  %1300 = vmatpush1.msra.mxu0 0.0
  %1301 = vmatprep.subr.mxu0 0.0
  %1302 = vmatpush1.msra.mxu0 0.0
  %1303 = vmatprep.subr.mxu0 0.0
  %v1304 = vand.u32 %v1269, 4294901760
  %1305 = vmatpush1.msra.mxu0 %v1304
  %1306 = vmatprep.subr.mxu0 0.0
  %1307 = vmatpush2.msra.mxu0 0.0
  %1308 = vmatprep.subr.mxu0 0.0
  %1309 = vmatpush2.msra.mxu0 0.0
  %1310 = vmatprep.subr.mxu0 0.0
  %1311 = vmatpush2.msra.mxu0 0.0
  %1312 = vmatprep.subr.mxu0 0.0
  %1313 = vmatpush2.msra.mxu0 0.0
  %1314 = vmatprep.subr.mxu0 0.0
  %1315 = vmatpush2.msra.mxu0 0.0
  %1316 = vmatprep.subr.mxu0 0.0
  %1317 = vmatpush2.msra.mxu0 0.0
  %1318 = vmatprep.subr.mxu0 0.0
  %1319 = vmatpush2.msra.mxu0 0.0
  %1320 = vmatprep.subr.mxu0 0.0
  %1321 = vmatpush2.msra.mxu0 0.0
  %1322 = vmatprep.subr.mxu0 0.0
  %1323 = vmatpush2.msra.mxu0 0.0
  %1324 = vmatprep.subr.mxu0 0.0
  %1325 = vmatpush2.msra.mxu0 0.0
  %1326 = vmatprep.subr.mxu0 0.0
  %1327 = vmatpush2.msra.mxu0 0.0
  %1328 = vmatprep.subr.mxu0 0.0
  %1329 = vmatpush2.msra.mxu0 0.0
  %1330 = vmatprep.subr.mxu0 0.0
  %1331 = vmatpush2.msra.mxu0 0.0
  %1332 = vmatprep.subr.mxu0 0.0
  %1333 = vmatpush2.msra.mxu0 0.0
  %1334 = vmatprep.subr.mxu0 0.0
  %1335 = vmatpush2.msra.mxu0 0.0
  %1336 = vmatprep.subr.mxu0 0.0
  %1337 = vmatpush2.msra.mxu0 0.0
  %1338 = vmatprep.mubr.f32.mxu0 0.0
  %v1339 = vand.u32 %v1271, 4294901760
  %v1340 = vsub.f32 %v1271, %v1339
  %v1341 = vand.u32 %v1340, 4294901760
  %v1342 = vsub.f32 %v1340, %v1341
  %v1343 = vand.u32 %v1342, 4294901760
  %1344 = vmatmul.mubr.f32.gmra.mxu0 %v1343
  %v1345 = vpop.f32.mrf.mxu0
  %v1346 = vadd.f32 0.0, %v1345
  %v1347 = vpop.f32.mrf.mxu0
  %1348 = vdwg.mxu0
  %1349 = vmatprep.subr.mxu0 0.0
  %1350 = vmatpush1.msra.mxu0 0.0
  %1351 = vmatprep.subr.mxu0 0.0
  %1352 = vmatpush1.msra.mxu0 0.0
  %1353 = vmatprep.subr.mxu0 0.0
  %1354 = vmatpush1.msra.mxu0 0.0
  %1355 = vmatprep.subr.mxu0 0.0
  %1356 = vmatpush1.msra.mxu0 0.0
  %1357 = vmatprep.subr.mxu0 0.0
  %1358 = vmatpush1.msra.mxu0 0.0
  %1359 = vmatprep.subr.mxu0 0.0
  %1360 = vmatpush1.msra.mxu0 0.0
  %1361 = vmatprep.subr.mxu0 0.0
  %1362 = vmatpush1.msra.mxu0 0.0
  %1363 = vmatprep.subr.mxu0 0.0
  %1364 = vmatpush1.msra.mxu0 0.0
  %1365 = vmatprep.subr.mxu0 0.0
  %1366 = vmatpush1.msra.mxu0 0.0
  %1367 = vmatprep.subr.mxu0 0.0
  %1368 = vmatpush1.msra.mxu0 0.0
  %1369 = vmatprep.subr.mxu0 0.0
  %1370 = vmatpush1.msra.mxu0 0.0
  %1371 = vmatprep.subr.mxu0 0.0
  %1372 = vmatpush1.msra.mxu0 0.0
  %1373 = vmatprep.subr.mxu0 0.0
  %1374 = vmatpush1.msra.mxu0 0.0
  %1375 = vmatprep.subr.mxu0 0.0
  %1376 = vmatpush1.msra.mxu0 0.0
  %1377 = vmatprep.subr.mxu0 0.0
  %1378 = vmatpush1.msra.mxu0 0.0
  %1379 = vmatprep.subr.mxu0 0.0
  %v1380 = vand.u32 %v1269, 4294901760
  %v1381 = vsub.f32 %v1269, %v1380
  %v1382 = vand.u32 %v1381, 4294901760
  %v1383 = vsub.f32 %v1381, %v1382
  %v1384 = vand.u32 %v1383, 4294901760
  %1385 = vmatpush1.msra.mxu0 %v1384
  %1386 = vmatprep.subr.mxu0 0.0
  %1387 = vmatpush2.msra.mxu0 0.0
  %1388 = vmatprep.subr.mxu0 0.0
  %1389 = vmatpush2.msra.mxu0 0.0
  %1390 = vmatprep.subr.mxu0 0.0
  %1391 = vmatpush2.msra.mxu0 0.0
  %1392 = vmatprep.subr.mxu0 0.0
  %1393 = vmatpush2.msra.mxu0 0.0
  %1394 = vmatprep.subr.mxu0 0.0
  %1395 = vmatpush2.msra.mxu0 0.0
  %1396 = vmatprep.subr.mxu0 0.0
  %1397 = vmatpush2.msra.mxu0 0.0
  %1398 = vmatprep.subr.mxu0 0.0
  %1399 = vmatpush2.msra.mxu0 0.0
  %1400 = vmatprep.subr.mxu0 0.0
  %1401 = vmatpush2.msra.mxu0 0.0
  %1402 = vmatprep.subr.mxu0 0.0
  %1403 = vmatpush2.msra.mxu0 0.0
  %1404 = vmatprep.subr.mxu0 0.0
  %1405 = vmatpush2.msra.mxu0 0.0
  %1406 = vmatprep.subr.mxu0 0.0
  %1407 = vmatpush2.msra.mxu0 0.0
  %1408 = vmatprep.subr.mxu0 0.0
  %1409 = vmatpush2.msra.mxu0 0.0
  %1410 = vmatprep.subr.mxu0 0.0
  %1411 = vmatpush2.msra.mxu0 0.0
  %1412 = vmatprep.subr.mxu0 0.0
  %1413 = vmatpush2.msra.mxu0 0.0
  %1414 = vmatprep.subr.mxu0 0.0
  %1415 = vmatpush2.msra.mxu0 0.0
  %1416 = vmatprep.subr.mxu0 0.0
  %1417 = vmatpush2.msra.mxu0 0.0
  %1418 = vmatprep.mubr.f32.mxu0 0.0
  %v1419 = vand.u32 %v1271, 4294901760
  %1420 = vmatmul.mubr.f32.gmra.mxu0 %v1419
  %v1421 = vpop.f32.mrf.mxu0
  %v1422 = vadd.f32 %v1346, %v1421
  %v1423 = vpop.f32.mrf.mxu0
  %1424 = vdwg.mxu0
  %1425 = vmatprep.subr.mxu0 0.0
  %1426 = vmatpush1.msra.mxu0 0.0
  %1427 = vmatprep.subr.mxu0 0.0
  %1428 = vmatpush1.msra.mxu0 0.0
  %1429 = vmatprep.subr.mxu0 0.0
  %1430 = vmatpush1.msra.mxu0 0.0
  %1431 = vmatprep.subr.mxu0 0.0
  %1432 = vmatpush1.msra.mxu0 0.0
  %1433 = vmatprep.subr.mxu0 0.0
  %1434 = vmatpush1.msra.mxu0 0.0
  %1435 = vmatprep.subr.mxu0 0.0
  %1436 = vmatpush1.msra.mxu0 0.0
  %1437 = vmatprep.subr.mxu0 0.0
  %1438 = vmatpush1.msra.mxu0 0.0
  %1439 = vmatprep.subr.mxu0 0.0
  %1440 = vmatpush1.msra.mxu0 0.0
  %1441 = vmatprep.subr.mxu0 0.0
  %1442 = vmatpush1.msra.mxu0 0.0
  %1443 = vmatprep.subr.mxu0 0.0
  %1444 = vmatpush1.msra.mxu0 0.0
  %1445 = vmatprep.subr.mxu0 0.0
  %1446 = vmatpush1.msra.mxu0 0.0
  %1447 = vmatprep.subr.mxu0 0.0
  %1448 = vmatpush1.msra.mxu0 0.0
  %1449 = vmatprep.subr.mxu0 0.0
  %1450 = vmatpush1.msra.mxu0 0.0
  %1451 = vmatprep.subr.mxu0 0.0
  %1452 = vmatpush1.msra.mxu0 0.0
  %1453 = vmatprep.subr.mxu0 0.0
  %1454 = vmatpush1.msra.mxu0 0.0
  %1455 = vmatprep.subr.mxu0 0.0
  %v1456 = vand.u32 %v1269, 4294901760
  %v1457 = vsub.f32 %v1269, %v1456
  %1458 = vmatpush1.msra.mxu0 %v1457
  %1459 = vmatprep.subr.mxu0 0.0
  %1460 = vmatpush2.msra.mxu0 0.0
  %1461 = vmatprep.subr.mxu0 0.0
  %1462 = vmatpush2.msra.mxu0 0.0
  %1463 = vmatprep.subr.mxu0 0.0
  %1464 = vmatpush2.msra.mxu0 0.0
  %1465 = vmatprep.subr.mxu0 0.0
  %1466 = vmatpush2.msra.mxu0 0.0
  %1467 = vmatprep.subr.mxu0 0.0
  %1468 = vmatpush2.msra.mxu0 0.0
  %1469 = vmatprep.subr.mxu0 0.0
  %1470 = vmatpush2.msra.mxu0 0.0
  %1471 = vmatprep.subr.mxu0 0.0
  %1472 = vmatpush2.msra.mxu0 0.0
  %1473 = vmatprep.subr.mxu0 0.0
  %1474 = vmatpush2.msra.mxu0 0.0
  %1475 = vmatprep.subr.mxu0 0.0
  %1476 = vmatpush2.msra.mxu0 0.0
  %1477 = vmatprep.subr.mxu0 0.0
  %1478 = vmatpush2.msra.mxu0 0.0
  %1479 = vmatprep.subr.mxu0 0.0
  %1480 = vmatpush2.msra.mxu0 0.0
  %1481 = vmatprep.subr.mxu0 0.0
  %1482 = vmatpush2.msra.mxu0 0.0
  %1483 = vmatprep.subr.mxu0 0.0
  %1484 = vmatpush2.msra.mxu0 0.0
  %1485 = vmatprep.subr.mxu0 0.0
  %1486 = vmatpush2.msra.mxu0 0.0
  %1487 = vmatprep.subr.mxu0 0.0
  %1488 = vmatpush2.msra.mxu0 0.0
  %1489 = vmatprep.subr.mxu0 0.0
  %1490 = vmatpush2.msra.mxu0 0.0
  %1491 = vmatprep.mubr.f32.mxu0 0.0
  %v1492 = vand.u32 %v1271, 4294901760
  %v1493 = vsub.f32 %v1271, %v1492
  %1494 = vmatmul.mubr.f32.gmra.mxu0 %v1493
  %v1495 = vpop.f32.mrf.mxu0
  %v1496 = vadd.f32 %v1422, %v1495
  %v1497 = vpop.f32.mrf.mxu0
  %1498 = vdwg.mxu0
  %1499 = vmatprep.subr.mxu0 0.0
  %1500 = vmatpush1.msra.mxu0 0.0
  %1501 = vmatprep.subr.mxu0 0.0
  %1502 = vmatpush1.msra.mxu0 0.0
  %1503 = vmatprep.subr.mxu0 0.0
  %1504 = vmatpush1.msra.mxu0 0.0
  %1505 = vmatprep.subr.mxu0 0.0
  %1506 = vmatpush1.msra.mxu0 0.0
  %1507 = vmatprep.subr.mxu0 0.0
  %1508 = vmatpush1.msra.mxu0 0.0
  %1509 = vmatprep.subr.mxu0 0.0
  %1510 = vmatpush1.msra.mxu0 0.0
  %1511 = vmatprep.subr.mxu0 0.0
  %1512 = vmatpush1.msra.mxu0 0.0
  %1513 = vmatprep.subr.mxu0 0.0
  %1514 = vmatpush1.msra.mxu0 0.0
  %1515 = vmatprep.subr.mxu0 0.0
  %1516 = vmatpush1.msra.mxu0 0.0
  %1517 = vmatprep.subr.mxu0 0.0
  %1518 = vmatpush1.msra.mxu0 0.0
  %1519 = vmatprep.subr.mxu0 0.0
  %1520 = vmatpush1.msra.mxu0 0.0
  %1521 = vmatprep.subr.mxu0 0.0
  %1522 = vmatpush1.msra.mxu0 0.0
  %1523 = vmatprep.subr.mxu0 0.0
  %1524 = vmatpush1.msra.mxu0 0.0
  %1525 = vmatprep.subr.mxu0 0.0
  %1526 = vmatpush1.msra.mxu0 0.0
  %1527 = vmatprep.subr.mxu0 0.0
  %1528 = vmatpush1.msra.mxu0 0.0
  %1529 = vmatprep.subr.mxu0 0.0
  %v1530 = vand.u32 %v1269, 4294901760
  %1531 = vmatpush1.msra.mxu0 %v1530
  %1532 = vmatprep.subr.mxu0 0.0
  %1533 = vmatpush2.msra.mxu0 0.0
  %1534 = vmatprep.subr.mxu0 0.0
  %1535 = vmatpush2.msra.mxu0 0.0
  %1536 = vmatprep.subr.mxu0 0.0
  %1537 = vmatpush2.msra.mxu0 0.0
  %1538 = vmatprep.subr.mxu0 0.0
  %1539 = vmatpush2.msra.mxu0 0.0
  %1540 = vmatprep.subr.mxu0 0.0
  %1541 = vmatpush2.msra.mxu0 0.0
  %1542 = vmatprep.subr.mxu0 0.0
  %1543 = vmatpush2.msra.mxu0 0.0
  %1544 = vmatprep.subr.mxu0 0.0
  %1545 = vmatpush2.msra.mxu0 0.0
  %1546 = vmatprep.subr.mxu0 0.0
  %1547 = vmatpush2.msra.mxu0 0.0
  %1548 = vmatprep.subr.mxu0 0.0
  %1549 = vmatpush2.msra.mxu0 0.0
  %1550 = vmatprep.subr.mxu0 0.0
  %1551 = vmatpush2.msra.mxu0 0.0
  %1552 = vmatprep.subr.mxu0 0.0
  %1553 = vmatpush2.msra.mxu0 0.0
  %1554 = vmatprep.subr.mxu0 0.0
  %1555 = vmatpush2.msra.mxu0 0.0
  %1556 = vmatprep.subr.mxu0 0.0
  %1557 = vmatpush2.msra.mxu0 0.0
  %1558 = vmatprep.subr.mxu0 0.0
  %1559 = vmatpush2.msra.mxu0 0.0
  %1560 = vmatprep.subr.mxu0 0.0
  %1561 = vmatpush2.msra.mxu0 0.0
  %1562 = vmatprep.subr.mxu0 0.0
  %1563 = vmatpush2.msra.mxu0 0.0
  %1564 = vmatprep.mubr.f32.mxu0 0.0
  %v1565 = vand.u32 %v1271, 4294901760
  %v1566 = vsub.f32 %v1271, %v1565
  %v1567 = vand.u32 %v1566, 4294901760
  %1568 = vmatmul.mubr.f32.gmra.mxu0 %v1567
  %v1569 = vpop.f32.mrf.mxu0
  %v1570 = vadd.f32 %v1496, %v1569
  %v1571 = vpop.f32.mrf.mxu0
  %1572 = vdwg.mxu0
  %1573 = vmatprep.subr.mxu0 0.0
  %1574 = vmatpush1.msra.mxu0 0.0
  %1575 = vmatprep.subr.mxu0 0.0
  %1576 = vmatpush1.msra.mxu0 0.0
  %1577 = vmatprep.subr.mxu0 0.0
  %1578 = vmatpush1.msra.mxu0 0.0
  %1579 = vmatprep.subr.mxu0 0.0
  %1580 = vmatpush1.msra.mxu0 0.0
  %1581 = vmatprep.subr.mxu0 0.0
  %1582 = vmatpush1.msra.mxu0 0.0
  %1583 = vmatprep.subr.mxu0 0.0
  %1584 = vmatpush1.msra.mxu0 0.0
  %1585 = vmatprep.subr.mxu0 0.0
  %1586 = vmatpush1.msra.mxu0 0.0
  %1587 = vmatprep.subr.mxu0 0.0
  %1588 = vmatpush1.msra.mxu0 0.0
  %1589 = vmatprep.subr.mxu0 0.0
  %1590 = vmatpush1.msra.mxu0 0.0
  %1591 = vmatprep.subr.mxu0 0.0
  %1592 = vmatpush1.msra.mxu0 0.0
  %1593 = vmatprep.subr.mxu0 0.0
  %1594 = vmatpush1.msra.mxu0 0.0
  %1595 = vmatprep.subr.mxu0 0.0
  %1596 = vmatpush1.msra.mxu0 0.0
  %1597 = vmatprep.subr.mxu0 0.0
  %1598 = vmatpush1.msra.mxu0 0.0
  %1599 = vmatprep.subr.mxu0 0.0
  %1600 = vmatpush1.msra.mxu0 0.0
  %1601 = vmatprep.subr.mxu0 0.0
  %1602 = vmatpush1.msra.mxu0 0.0
  %1603 = vmatprep.subr.mxu0 0.0
  %v1604 = vand.u32 %v1269, 4294901760
  %v1605 = vsub.f32 %v1269, %v1604
  %v1606 = vand.u32 %v1605, 4294901760
  %1607 = vmatpush1.msra.mxu0 %v1606
  %1608 = vmatprep.subr.mxu0 0.0
  %1609 = vmatpush2.msra.mxu0 0.0
  %1610 = vmatprep.subr.mxu0 0.0
  %1611 = vmatpush2.msra.mxu0 0.0
  %1612 = vmatprep.subr.mxu0 0.0
  %1613 = vmatpush2.msra.mxu0 0.0
  %1614 = vmatprep.subr.mxu0 0.0
  %1615 = vmatpush2.msra.mxu0 0.0
  %1616 = vmatprep.subr.mxu0 0.0
  %1617 = vmatpush2.msra.mxu0 0.0
  %1618 = vmatprep.subr.mxu0 0.0
  %1619 = vmatpush2.msra.mxu0 0.0
  %1620 = vmatprep.subr.mxu0 0.0
  %1621 = vmatpush2.msra.mxu0 0.0
  %1622 = vmatprep.subr.mxu0 0.0
  %1623 = vmatpush2.msra.mxu0 0.0
  %1624 = vmatprep.subr.mxu0 0.0
  %1625 = vmatpush2.msra.mxu0 0.0
  %1626 = vmatprep.subr.mxu0 0.0
  %1627 = vmatpush2.msra.mxu0 0.0
  %1628 = vmatprep.subr.mxu0 0.0
  %1629 = vmatpush2.msra.mxu0 0.0
  %1630 = vmatprep.subr.mxu0 0.0
  %1631 = vmatpush2.msra.mxu0 0.0
  %1632 = vmatprep.subr.mxu0 0.0
  %1633 = vmatpush2.msra.mxu0 0.0
  %1634 = vmatprep.subr.mxu0 0.0
  %1635 = vmatpush2.msra.mxu0 0.0
  %1636 = vmatprep.subr.mxu0 0.0
  %1637 = vmatpush2.msra.mxu0 0.0
  %1638 = vmatprep.subr.mxu0 0.0
  %1639 = vmatpush2.msra.mxu0 0.0
  %1640 = vmatprep.mubr.f32.mxu0 0.0
  %v1641 = vand.u32 %v1271, 4294901760
  %1642 = vmatmul.mubr.f32.gmra.mxu0 %v1641
  %v1643 = vpop.f32.mrf.mxu0
  %v1644 = vadd.f32 %v1570, %v1643
  %v1645 = vpop.f32.mrf.mxu0
  %1646 = vdwg.mxu0
  %1647 = vmatprep.subr.mxu0 0.0
  %1648 = vmatpush1.msra.mxu0 0.0
  %1649 = vmatprep.subr.mxu0 0.0
  %1650 = vmatpush1.msra.mxu0 0.0
  %1651 = vmatprep.subr.mxu0 0.0
  %1652 = vmatpush1.msra.mxu0 0.0
  %1653 = vmatprep.subr.mxu0 0.0
  %1654 = vmatpush1.msra.mxu0 0.0
  %1655 = vmatprep.subr.mxu0 0.0
  %1656 = vmatpush1.msra.mxu0 0.0
  %1657 = vmatprep.subr.mxu0 0.0
  %1658 = vmatpush1.msra.mxu0 0.0
  %1659 = vmatprep.subr.mxu0 0.0
  %1660 = vmatpush1.msra.mxu0 0.0
  %1661 = vmatprep.subr.mxu0 0.0
  %1662 = vmatpush1.msra.mxu0 0.0
  %1663 = vmatprep.subr.mxu0 0.0
  %1664 = vmatpush1.msra.mxu0 0.0
  %1665 = vmatprep.subr.mxu0 0.0
  %1666 = vmatpush1.msra.mxu0 0.0
  %1667 = vmatprep.subr.mxu0 0.0
  %1668 = vmatpush1.msra.mxu0 0.0
  %1669 = vmatprep.subr.mxu0 0.0
  %1670 = vmatpush1.msra.mxu0 0.0
  %1671 = vmatprep.subr.mxu0 0.0
  %1672 = vmatpush1.msra.mxu0 0.0
  %1673 = vmatprep.subr.mxu0 0.0
  %1674 = vmatpush1.msra.mxu0 0.0
  %1675 = vmatprep.subr.mxu0 0.0
  %1676 = vmatpush1.msra.mxu0 0.0
  %1677 = vmatprep.subr.mxu0 0.0
  %v1678 = vand.u32 %v1269, 4294901760
  %1679 = vmatpush1.msra.mxu0 %v1678
  %1680 = vmatprep.subr.mxu0 0.0
  %1681 = vmatpush2.msra.mxu0 0.0
  %1682 = vmatprep.subr.mxu0 0.0
  %1683 = vmatpush2.msra.mxu0 0.0
  %1684 = vmatprep.subr.mxu0 0.0
  %1685 = vmatpush2.msra.mxu0 0.0
  %1686 = vmatprep.subr.mxu0 0.0
  %1687 = vmatpush2.msra.mxu0 0.0
  %1688 = vmatprep.subr.mxu0 0.0
  %1689 = vmatpush2.msra.mxu0 0.0
  %1690 = vmatprep.subr.mxu0 0.0
  %1691 = vmatpush2.msra.mxu0 0.0
  %1692 = vmatprep.subr.mxu0 0.0
  %1693 = vmatpush2.msra.mxu0 0.0
  %1694 = vmatprep.subr.mxu0 0.0
  %1695 = vmatpush2.msra.mxu0 0.0
  %1696 = vmatprep.subr.mxu0 0.0
  %1697 = vmatpush2.msra.mxu0 0.0
  %1698 = vmatprep.subr.mxu0 0.0
  %1699 = vmatpush2.msra.mxu0 0.0
  %1700 = vmatprep.subr.mxu0 0.0
  %1701 = vmatpush2.msra.mxu0 0.0
  %1702 = vmatprep.subr.mxu0 0.0
  %1703 = vmatpush2.msra.mxu0 0.0
  %1704 = vmatprep.subr.mxu0 0.0
  %1705 = vmatpush2.msra.mxu0 0.0
  %1706 = vmatprep.subr.mxu0 0.0
  %1707 = vmatpush2.msra.mxu0 0.0
  %1708 = vmatprep.subr.mxu0 0.0
  %1709 = vmatpush2.msra.mxu0 0.0
  %1710 = vmatprep.subr.mxu0 0.0
  %1711 = vmatpush2.msra.mxu0 0.0
  %1712 = vmatprep.mubr.f32.mxu0 0.0
  %v1713 = vand.u32 %v1271, 4294901760
  %1714 = vmatmul.mubr.f32.gmra.mxu0 %v1713
  %v1715 = vpop.f32.mrf.mxu0
  %v1716 = vadd.f32 %v1644, %v1715
  %v1717 = vpop.f32.mrf.mxu0
  %1718 = vdwg.mxu0
  %vm1719 = vcmask 123904
  %v1720 = vsel %vm1719, %v1716, 0.0
  %1721 = vadd.xlane.f32.xlu0 %v1720
  %v1722 = vpop.xlane.xlu0 %1721
  %v1723 = vlaneseq
  %v1724 = vshrl.u32 %v1723, 7
  %v1725 = vsub.s32 0, %v1724
  %v1726 = vrot.slane %v1268, %v1725
  %v1727 = vadd.f32 %v1722, %v1726
  %v1728 = vxor.u32 %v1727, 2147483648
  %v1729 = vmul.f32 %v1728, 1.442695
  %v1730 = vpow.pop %v1729
  %v1731 = vadd.f32 %v1730, 1.0
  %v1732 = vrcp.pop %v1731
  %v1733 = vmul.f32 1.0, %v1732
  %vm1734 = vcmask 1024
  %1735 = vst.msk [vmem:[%s2] sm:$0x3] %vm1734, %v1733
  // Predicated region
  $region10: #{cnn_forward_pallas.1} parent=0 // pred_check
    _
  $region11: #{cnn_forward_pallas.1} parent=0 // pred_check_branch
    %1737 = sbr.rel (0) target = $region13
  $region12: #{cnn_forward_pallas.1} parent=0 // pred_region
    _
  $region13: #{cnn_forward_pallas.1} parent=0 // pred_fallthru
    _
  // Predicated region
  $region14: #{cnn_forward_pallas.1} parent=0 // pred_check
    _
  $region15: #{cnn_forward_pallas.1} parent=0 // pred_check_branch
    %1739 = sbr.rel (0) target = $region17
  $region16: #{cnn_forward_pallas.1} parent=0 // pred_region
    _
  $region17: #{cnn_forward_pallas.1} parent=0 // pred_fallthru
    _

</llo_original>
